<compile_context>
chip_gen: v6e
topology: v6e:2x2x1
jax: 0.10.0
libtpu: 0.0.40
codegen_flags: <defaults>
</compile_context>

<pallas_src>
import functools

import numpy as np
import jax
import jax.numpy as jnp
from jax.experimental import pallas as pl
from jax.experimental.pallas import tpu as pltpu


# --------------------------- offline weight prep ---------------------------- #

def _conv1d_as_matrix(w, length, left):
    """M (L*Cin, L*Cout) s.t. flat_out = flat_in @ M implements a 'same'-padded
    Conv1d (cross-correlation, PyTorch semantics) over `length` positions.
    Flat layouts are position-major / channel-minor: idx = l*C + c.
    w: (Cout, Cin, K) PyTorch Conv1d weight; `left` = left zero-padding."""
    w = np.asarray(w, dtype=np.float32)
    c_out, c_in, k = w.shape
    m = np.zeros((length, c_in, length, c_out), np.float32)
    for dk in range(k):
        for lo in range(length):
            li = lo + dk - left          # output position lo reads input li
            if 0 <= li < length:
                m[li, :, lo, :] += w[:, :, dk].T
    return m.reshape(length * c_in, length * c_out)


def _fold_nearest_upsample2(m, channels):
    """Fold a nearest x2 upsample (over positions) feeding the conv matrix
    m ((2L*C, Dout)) into it -> (L*C, Dout). Exact (row-pair sum)."""
    rows, d_out = m.shape
    l2 = rows // channels
    return m.reshape(l2 // 2, 2, channels, d_out).sum(axis=1).reshape(
        (l2 // 2) * channels, d_out)


def _tile_bias(b, length):
    """Per-channel conv bias broadcast over positions in (l, c) layout."""
    b = np.asarray(b, dtype=np.float32)
    return np.tile(b, length).reshape(1, -1)


def prepare_params(params, z_dim, latent_dim, n_layers, data_seqlen):
    """Convert PyTorch-layout DecoderNet params into the fused-matmul weights
    consumed by the Pallas kernel (done once, on host)."""
    ld = latent_dim
    ls = data_seqlen
    lc = ls // 4
    c4, c2 = 4 * ld, 2 * ld

    w = []
    # linear1: permute output columns from PyTorch's (c, l) flatten to (l, c).
    w1 = np.asarray(params["linear1_w"], np.float32)            # (c4*lc, z_dim)
    b1 = np.asarray(params["linear1_b"], np.float32)
    w.append(w1.T.reshape(z_dim, c4, lc).transpose(0, 2, 1).reshape(z_dim, lc * c4))
    w.append(b1.reshape(c4, lc).T.reshape(1, lc * c4))
    # conv1..conv3 (k=3, same padding -> left=1).
    for name in ("conv1", "conv2", "conv3"):
        w.append(_conv1d_as_matrix(params[f"{name}_w"], lc, left=1))
        w.append(_tile_bias(params[f"{name}_b"], lc))
    # ResBlocks.
    for i in range(n_layers):
        for j in (1, 2):
            w.append(_conv1d_as_matrix(params[f"res{i}_c{j}_w"], lc, left=1))
            w.append(_tile_bias(params[f"res{i}_c{j}_b"], lc))
    # upsample1 (nearest x2) folded into conv4.
    m4 = _conv1d_as_matrix(params["conv4_w"], 2 * lc, left=1)
    w.append(_fold_nearest_upsample2(m4, c2))
    w.append(_tile_bias(params["conv4_b"], 2 * lc))
    # upsample2 folded into conv5 (k=6, 'same' -> asymmetric pad left=2, right=3).
    m5 = _conv1d_as_matrix(params["conv5_w"], 4 * lc, left=2)
    w.append(_fold_nearest_upsample2(m5, ld))
    w.append(_tile_bias(params["conv5_b"], 4 * lc))
    # linear2: permute input rows from PyTorch's (c, l) flatten to (l, c).
    w2 = np.asarray(params["linear2_w"], np.float32)            # (4*ls, 4*ls)
    b2 = np.asarray(params["linear2_b"], np.float32)
    w.append(w2.T.reshape(4, ls, 4 * ls).transpose(1, 0, 2).reshape(ls * 4, 4 * ls))
    w.append(b2.reshape(1, 4 * ls))
    return tuple(jnp.asarray(a, jnp.float32) for a in w)


# ------------------------------ Pallas forward ------------------------------ #

def decoder_forward(x, weights, n_layers, data_seqlen):
    """x: (B, z_dim) f32 -> (B, data_seqlen, 4) f32. Single fused Pallas kernel."""
    batch = x.shape[0]
    out_dim = data_seqlen * 4

    def kernel(*refs):
        x_ref, out_ref = refs[0], refs[-1]
        w = refs[1:-1]

        def dense(h, k):
            return (jnp.dot(h, w[2 * k][...],
                            preferred_element_type=jnp.float32)
                    + w[2 * k + 1][...])

        def leaky(h):                       # nn.LeakyReLU default slope 0.01
            return jnp.where(h >= 0, h, 0.01 * h)

        h = x_ref[...]
        h = dense(h, 0)                     # linear1 (pre-permuted to (l,c))
        h = jnp.maximum(dense(h, 1), 0.0)   # conv1 + relu1
        h = jnp.maximum(dense(h, 2), 0.0)   # conv2 + relu2
        h = jnp.maximum(dense(h, 3), 0.0)   # conv3 + relu3
        k = 4
        for _ in range(n_layers):           # ResBlock: x + c2(lrelu(c1(lrelu(x))))
            res = h
            t = dense(leaky(h), k)
            t = dense(leaky(t), k + 1)
            h = res + t
            k += 2
        h = dense(h, k)                     # upsample1 + conv4 (fused matrix)
        h = dense(h, k + 1)                 # upsample2 + conv5 (fused matrix)
        h = dense(h, k + 2)                 # linear2 (pre-permuted rows)
        out_ref[...] = h.astype(out_ref.dtype)

    def full_spec(shape):
        return pl.BlockSpec(shape, lambda i, nd=len(shape): (0,) * nd)

    out = pl.pallas_call(
        kernel,
        out_shape=jax.ShapeDtypeStruct((batch, out_dim), jnp.float32),
        grid=(1,),
        in_specs=[full_spec(x.shape)] + [full_spec(a.shape) for a in weights],
        out_specs=full_spec((batch, out_dim)),
        compiler_params=pltpu.CompilerParams(
            dimension_semantics=("arbitrary",)),
    )(x, *weights)
    return out.reshape(batch, data_seqlen, 4)


# --------------------------- params & pure-JAX ref --------------------------- #

def init_params(key, z_dim, latent_dim, n_layers, data_seqlen):
    ld = latent_dim
    ls = data_seqlen
    lc = ls // 4
    c4, c2 = 4 * ld, 2 * ld
    keys = iter(jax.random.split(key, 64))

    def uniform(shape, fan_in):
        bound = 1.0 / float(np.sqrt(fan_in))
        return jax.random.uniform(next(keys), shape, jnp.float32, -bound, bound)

    p = {
        "linear1_w": uniform((c4 * lc, z_dim), z_dim),
        "linear1_b": uniform((c4 * lc,), z_dim),
        "conv1_w": uniform((c4, c4, 3), c4 * 3), "conv1_b": uniform((c4,), c4 * 3),
        "conv2_w": uniform((c4, c4, 3), c4 * 3), "conv2_b": uniform((c4,), c4 * 3),
        "conv3_w": uniform((c2, c4, 3), c4 * 3), "conv3_b": uniform((c2,), c4 * 3),
        "conv4_w": uniform((ld, c2, 3), c2 * 3), "conv4_b": uniform((ld,), c2 * 3),
        "conv5_w": uniform((4, ld, 6), ld * 6), "conv5_b": uniform((4,), ld * 6),
        "linear2_w": uniform((ls * 4, 4 * ls), 4 * ls),
        "linear2_b": uniform((ls * 4,), 4 * ls),
    }
    for i in range(n_layers):
        p[f"res{i}_c1_w"] = uniform((c2, c2, 3), c2 * 3)
        p[f"res{i}_c1_b"] = uniform((c2,), c2 * 3)
        p[f"res{i}_c2_w"] = uniform((c2, c2, 3), c2 * 3)
        p[f"res{i}_c2_b"] = uniform((c2,), c2 * 3)
    return p


def reference_forward(x, params, latent_dim, n_layers, data_seqlen):
    """Pure-JAX/XLA mirror of PyTorch DecoderNet.forward (NCL layout)."""
    ld = latent_dim
    ls = data_seqlen
    lc = ls // 4
    c4 = 4 * ld
    batch = x.shape[0]

    def conv1d_same(h, w, b):
        # h: (B, Cin, L); w: (Cout, Cin, K); PyTorch 'same' cross-correlation.
        k = w.shape[2]
        left = (k - 1) // 2
        right = k - 1 - left
        hp = jnp.pad(h, ((0, 0), (0, 0), (left, right)))
        length = h.shape[2]
        out = jnp.zeros((h.shape[0], w.shape[0], length), jnp.float32)
        for dk in range(k):
            out = out + jnp.einsum("bcl,oc->bol",
                                   hp[:, :, dk:dk + length], w[:, :, dk])
        return out + b[None, :, None]

    h = x @ params["linear1_w"].T + params["linear1_b"]
    h = h.reshape(batch, c4, lc)
    h = jax.nn.relu(conv1d_same(h, params["conv1_w"], params["conv1_b"]))
    h = jax.nn.relu(conv1d_same(h, params["conv2_w"], params["conv2_b"]))
    h = jax.nn.relu(conv1d_same(h, params["conv3_w"], params["conv3_b"]))
    for i in range(n_layers):
        t = jax.nn.leaky_relu(h, 0.01)
        t = conv1d_same(t, params[f"res{i}_c1_w"], params[f"res{i}_c1_b"])
        t = jax.nn.leaky_relu(t, 0.01)
        t = conv1d_same(t, params[f"res{i}_c2_w"], params[f"res{i}_c2_b"])
        h = h + t
    h = jnp.repeat(h, 2, axis=2)                      # upsample1 (nearest x2)
    h = conv1d_same(h, params["conv4_w"], params["conv4_b"])
    h = jnp.repeat(h, 2, axis=2)                      # upsample2 (nearest x2)
    h = conv1d_same(h, params["conv5_w"], params["conv5_b"])
    h = h.reshape(batch, 4 * ls)                      # (c, l)-ordered flatten
    h = h @ params["linear2_w"].T + params["linear2_b"]
    return h.reshape(batch, ls, 4)


if __name__ == "__main__":
    z_dim = 16
    latent_dim = 8
    n_layers = 2
    data_seqlen = 16        # divisible by 4
    batch = 4

    key = jax.random.PRNGKey(0)
    kx, kp = jax.random.split(key)
    x = jax.random.normal(kx, (batch, z_dim), jnp.float32)
    params = init_params(kp, z_dim, latent_dim, n_layers, data_seqlen)
    weights = prepare_params(params, z_dim, latent_dim, n_layers, data_seqlen)

    fwd = jax.jit(functools.partial(decoder_forward, n_layers=n_layers,
                                    data_seqlen=data_seqlen))
    out = jax.block_until_ready(fwd(x, weights))

    ref = reference_forward(x, params, latent_dim, n_layers, data_seqlen)
    assert out.shape == (batch, data_seqlen, 4), out.shape
    err = float(jnp.max(jnp.abs(out - ref)))
    assert jnp.allclose(out, ref, atol=2e-2, rtol=2e-2), f"max abs err {err}"
    print("KERNEL_OK")
</pallas_src>

<mosaic_0001>
module attributes {stable_mosaic.version = 11 : i64} {
  func.func @kernel(%arg0: i32, %arg1: memref<4x16xf32, #tpu.memory_space<vmem>>, %arg2: memref<16x128xf32, #tpu.memory_space<vmem>>, %arg3: memref<1x128xf32, #tpu.memory_space<vmem>>, %arg4: memref<128x128xf32, #tpu.memory_space<vmem>>, %arg5: memref<1x128xf32, #tpu.memory_space<vmem>>, %arg6: memref<128x128xf32, #tpu.memory_space<vmem>>, %arg7: memref<1x128xf32, #tpu.memory_space<vmem>>, %arg8: memref<128x64xf32, #tpu.memory_space<vmem>>, %arg9: memref<1x64xf32, #tpu.memory_space<vmem>>, %arg10: memref<64x64xf32, #tpu.memory_space<vmem>>, %arg11: memref<1x64xf32, #tpu.memory_space<vmem>>, %arg12: memref<64x64xf32, #tpu.memory_space<vmem>>, %arg13: memref<1x64xf32, #tpu.memory_space<vmem>>, %arg14: memref<64x64xf32, #tpu.memory_space<vmem>>, %arg15: memref<1x64xf32, #tpu.memory_space<vmem>>, %arg16: memref<64x64xf32, #tpu.memory_space<vmem>>, %arg17: memref<1x64xf32, #tpu.memory_space<vmem>>, %arg18: memref<64x64xf32, #tpu.memory_space<vmem>>, %arg19: memref<1x64xf32, #tpu.memory_space<vmem>>, %arg20: memref<64x64xf32, #tpu.memory_space<vmem>>, %arg21: memref<1x64xf32, #tpu.memory_space<vmem>>, %arg22: memref<64x64xf32, #tpu.memory_space<vmem>>, %arg23: memref<1x64xf32, #tpu.memory_space<vmem>>, %arg24: memref<4x64xf32, #tpu.memory_space<vmem>>) attributes {dimension_semantics = [#tpu.dimension_semantics<arbitrary>], iteration_bounds = array<i64: 1>, scalar_prefetch = 0 : i64, scratch_operands = 0 : i64, tpu.core_type = #tpu.core_type<tc>, window_params = [{pipeline_mode = #tpu.pipeline_mode<synchronous>, transform_indices = @transform_0, window_bounds = array<i64: 4, 16>}, {pipeline_mode = #tpu.pipeline_mode<synchronous>, transform_indices = @transform_1, window_bounds = array<i64: 16, 128>}, {pipeline_mode = #tpu.pipeline_mode<synchronous>, transform_indices = @transform_2, window_bounds = array<i64: 1, 128>}, {pipeline_mode = #tpu.pipeline_mode<synchronous>, transform_indices = @transform_3, window_bounds = array<i64: 128, 128>}, {pipeline_mode = #tpu.pipeline_mode<synchronous>, transform_indices = @transform_4, window_bounds = array<i64: 1, 128>}, {pipeline_mode = #tpu.pipeline_mode<synchronous>, transform_indices = @transform_5, window_bounds = array<i64: 128, 128>}, {pipeline_mode = #tpu.pipeline_mode<synchronous>, transform_indices = @transform_6, window_bounds = array<i64: 1, 128>}, {pipeline_mode = #tpu.pipeline_mode<synchronous>, transform_indices = @transform_7, window_bounds = array<i64: 128, 64>}, {pipeline_mode = #tpu.pipeline_mode<synchronous>, transform_indices = @transform_8, window_bounds = array<i64: 1, 64>}, {pipeline_mode = #tpu.pipeline_mode<synchronous>, transform_indices = @transform_9, window_bounds = array<i64: 64, 64>}, {pipeline_mode = #tpu.pipeline_mode<synchronous>, transform_indices = @transform_10, window_bounds = array<i64: 1, 64>}, {pipeline_mode = #tpu.pipeline_mode<synchronous>, transform_indices = @transform_11, window_bounds = array<i64: 64, 64>}, {pipeline_mode = #tpu.pipeline_mode<synchronous>, transform_indices = @transform_12, window_bounds = array<i64: 1, 64>}, {pipeline_mode = #tpu.pipeline_mode<synchronous>, transform_indices = @transform_13, window_bounds = array<i64: 64, 64>}, {pipeline_mode = #tpu.pipeline_mode<synchronous>, transform_indices = @transform_14, window_bounds = array<i64: 1, 64>}, {pipeline_mode = #tpu.pipeline_mode<synchronous>, transform_indices = @transform_15, window_bounds = array<i64: 64, 64>}, {pipeline_mode = #tpu.pipeline_mode<synchronous>, transform_indices = @transform_16, window_bounds = array<i64: 1, 64>}, {pipeline_mode = #tpu.pipeline_mode<synchronous>, transform_indices = @transform_17, window_bounds = array<i64: 64, 64>}, {pipeline_mode = #tpu.pipeline_mode<synchronous>, transform_indices = @transform_18, window_bounds = array<i64: 1, 64>}, {pipeline_mode = #tpu.pipeline_mode<synchronous>, transform_indices = @transform_19, window_bounds = array<i64: 64, 64>}, {pipeline_mode = #tpu.pipeline_mode<synchronous>, transform_indices = @transform_20, window_bounds = array<i64: 1, 64>}, {pipeline_mode = #tpu.pipeline_mode<synchronous>, transform_indices = @transform_21, window_bounds = array<i64: 64, 64>}, {pipeline_mode = #tpu.pipeline_mode<synchronous>, transform_indices = @transform_22, window_bounds = array<i64: 1, 64>}, {pipeline_mode = #tpu.pipeline_mode<synchronous>, transform_indices = @transform_23, window_bounds = array<i64: 4, 64>}]} {
    %c0 = arith.constant 0 : index
    %c0_0 = arith.constant 0 : index
    %0 = vector.load %arg1[%c0, %c0_0] : memref<4x16xf32, #tpu.memory_space<vmem>>, vector<4x16xf32>
    %c0_1 = arith.constant 0 : index
    %c0_2 = arith.constant 0 : index
    %1 = vector.load %arg2[%c0_1, %c0_2] : memref<16x128xf32, #tpu.memory_space<vmem>>, vector<16x128xf32>
    %cst = arith.constant dense<0.000000e+00> : vector<4x128xf32>
    %2 = tpu.matmul %0, %1, %cst {dimension_numbers = #tpu.dot_dimension_numbers<[1], [0], [0], [1], [0, 0, 1, 1], [], []>} : vector<4x16xf32>, vector<16x128xf32>, vector<4x128xf32> -> vector<4x128xf32>
    %c0_3 = arith.constant 0 : index
    %c0_4 = arith.constant 0 : index
    %3 = vector.load %arg3[%c0_3, %c0_4] : memref<1x128xf32, #tpu.memory_space<vmem>>, vector<1x128xf32>
    %4 = vector.broadcast %3 : vector<1x128xf32> to vector<4x128xf32>
    %5 = arith.addf %2, %4 : vector<4x128xf32>
    %c0_5 = arith.constant 0 : index
    %c0_6 = arith.constant 0 : index
    %6 = vector.load %arg4[%c0_5, %c0_6] : memref<128x128xf32, #tpu.memory_space<vmem>>, vector<128x128xf32>
    %cst_7 = arith.constant dense<0.000000e+00> : vector<4x128xf32>
    %7 = tpu.matmul %5, %6, %cst_7 {dimension_numbers = #tpu.dot_dimension_numbers<[1], [0], [0], [1], [0, 0, 1, 1], [], []>} : vector<4x128xf32>, vector<128x128xf32>, vector<4x128xf32> -> vector<4x128xf32>
    %c0_8 = arith.constant 0 : index
    %c0_9 = arith.constant 0 : index
    %8 = vector.load %arg5[%c0_8, %c0_9] : memref<1x128xf32, #tpu.memory_space<vmem>>, vector<1x128xf32>
    %9 = vector.broadcast %8 : vector<1x128xf32> to vector<4x128xf32>
    %10 = arith.addf %7, %9 : vector<4x128xf32>
    %cst_10 = arith.constant 0.000000e+00 : f32
    %11 = vector.broadcast %cst_10 : f32 to vector<4x128xf32>
    %12 = arith.maximumf %10, %11 : vector<4x128xf32>
    %c0_11 = arith.constant 0 : index
    %c0_12 = arith.constant 0 : index
    %13 = vector.load %arg6[%c0_11, %c0_12] : memref<128x128xf32, #tpu.memory_space<vmem>>, vector<128x128xf32>
    %cst_13 = arith.constant dense<0.000000e+00> : vector<4x128xf32>
    %14 = tpu.matmul %12, %13, %cst_13 {dimension_numbers = #tpu.dot_dimension_numbers<[1], [0], [0], [1], [0, 0, 1, 1], [], []>} : vector<4x128xf32>, vector<128x128xf32>, vector<4x128xf32> -> vector<4x128xf32>
    %c0_14 = arith.constant 0 : index
    %c0_15 = arith.constant 0 : index
    %15 = vector.load %arg7[%c0_14, %c0_15] : memref<1x128xf32, #tpu.memory_space<vmem>>, vector<1x128xf32>
    %16 = vector.broadcast %15 : vector<1x128xf32> to vector<4x128xf32>
    %17 = arith.addf %14, %16 : vector<4x128xf32>
    %cst_16 = arith.constant 0.000000e+00 : f32
    %18 = vector.broadcast %cst_16 : f32 to vector<4x128xf32>
    %19 = arith.maximumf %17, %18 : vector<4x128xf32>
    %c0_17 = arith.constant 0 : index
    %c0_18 = arith.constant 0 : index
    %20 = vector.load %arg8[%c0_17, %c0_18] : memref<128x64xf32, #tpu.memory_space<vmem>>, vector<128x64xf32>
    %cst_19 = arith.constant dense<0.000000e+00> : vector<4x64xf32>
    %21 = tpu.matmul %19, %20, %cst_19 {dimension_numbers = #tpu.dot_dimension_numbers<[1], [0], [0], [1], [0, 0, 1, 1], [], []>} : vector<4x128xf32>, vector<128x64xf32>, vector<4x64xf32> -> vector<4x64xf32>
    %c0_20 = arith.constant 0 : index
    %c0_21 = arith.constant 0 : index
    %22 = vector.load %arg9[%c0_20, %c0_21] : memref<1x64xf32, #tpu.memory_space<vmem>>, vector<1x64xf32>
    %23 = vector.broadcast %22 : vector<1x64xf32> to vector<4x64xf32>
    %24 = arith.addf %21, %23 : vector<4x64xf32>
    %cst_22 = arith.constant 0.000000e+00 : f32
    %25 = vector.broadcast %cst_22 : f32 to vector<4x64xf32>
    %26 = arith.maximumf %24, %25 : vector<4x64xf32>
    %cst_23 = arith.constant 0.000000e+00 : f32
    %27 = vector.broadcast %cst_23 : f32 to vector<4x64xf32>
    %28 = arith.cmpf oge, %26, %27 : vector<4x64xf32>
    %cst_24 = arith.constant 0.00999999977 : f32
    %29 = vector.broadcast %cst_24 : f32 to vector<4x64xf32>
    %30 = arith.mulf %29, %26 : vector<4x64xf32>
    %31 = arith.select %28, %26, %30 : vector<4x64xi1>, vector<4x64xf32>
    %c0_25 = arith.constant 0 : index
    %c0_26 = arith.constant 0 : index
    %32 = vector.load %arg10[%c0_25, %c0_26] : memref<64x64xf32, #tpu.memory_space<vmem>>, vector<64x64xf32>
    %cst_27 = arith.constant dense<0.000000e+00> : vector<4x64xf32>
    %33 = tpu.matmul %31, %32, %cst_27 {dimension_numbers = #tpu.dot_dimension_numbers<[1], [0], [0], [1], [0, 0, 1, 1], [], []>} : vector<4x64xf32>, vector<64x64xf32>, vector<4x64xf32> -> vector<4x64xf32>
    %c0_28 = arith.constant 0 : index
    %c0_29 = arith.constant 0 : index
    %34 = vector.load %arg11[%c0_28, %c0_29] : memref<1x64xf32, #tpu.memory_space<vmem>>, vector<1x64xf32>
    %35 = vector.broadcast %34 : vector<1x64xf32> to vector<4x64xf32>
    %36 = arith.addf %33, %35 : vector<4x64xf32>
    %cst_30 = arith.constant 0.000000e+00 : f32
    %37 = vector.broadcast %cst_30 : f32 to vector<4x64xf32>
    %38 = arith.cmpf oge, %36, %37 : vector<4x64xf32>
    %cst_31 = arith.constant 0.00999999977 : f32
    %39 = vector.broadcast %cst_31 : f32 to vector<4x64xf32>
    %40 = arith.mulf %39, %36 : vector<4x64xf32>
    %41 = arith.select %38, %36, %40 : vector<4x64xi1>, vector<4x64xf32>
    %c0_32 = arith.constant 0 : index
    %c0_33 = arith.constant 0 : index
    %42 = vector.load %arg12[%c0_32, %c0_33] : memref<64x64xf32, #tpu.memory_space<vmem>>, vector<64x64xf32>
    %cst_34 = arith.constant dense<0.000000e+00> : vector<4x64xf32>
    %43 = tpu.matmul %41, %42, %cst_34 {dimension_numbers = #tpu.dot_dimension_numbers<[1], [0], [0], [1], [0, 0, 1, 1], [], []>} : vector<4x64xf32>, vector<64x64xf32>, vector<4x64xf32> -> vector<4x64xf32>
    %c0_35 = arith.constant 0 : index
    %c0_36 = arith.constant 0 : index
    %44 = vector.load %arg13[%c0_35, %c0_36] : memref<1x64xf32, #tpu.memory_space<vmem>>, vector<1x64xf32>
    %45 = vector.broadcast %44 : vector<1x64xf32> to vector<4x64xf32>
    %46 = arith.addf %43, %45 : vector<4x64xf32>
    %47 = arith.addf %26, %46 : vector<4x64xf32>
    %cst_37 = arith.constant 0.000000e+00 : f32
    %48 = vector.broadcast %cst_37 : f32 to vector<4x64xf32>
    %49 = arith.cmpf oge, %47, %48 : vector<4x64xf32>
    %cst_38 = arith.constant 0.00999999977 : f32
    %50 = vector.broadcast %cst_38 : f32 to vector<4x64xf32>
    %51 = arith.mulf %50, %47 : vector<4x64xf32>
    %52 = arith.select %49, %47, %51 : vector<4x64xi1>, vector<4x64xf32>
    %c0_39 = arith.constant 0 : index
    %c0_40 = arith.constant 0 : index
    %53 = vector.load %arg14[%c0_39, %c0_40] : memref<64x64xf32, #tpu.memory_space<vmem>>, vector<64x64xf32>
    %cst_41 = arith.constant dense<0.000000e+00> : vector<4x64xf32>
    %54 = tpu.matmul %52, %53, %cst_41 {dimension_numbers = #tpu.dot_dimension_numbers<[1], [0], [0], [1], [0, 0, 1, 1], [], []>} : vector<4x64xf32>, vector<64x64xf32>, vector<4x64xf32> -> vector<4x64xf32>
    %c0_42 = arith.constant 0 : index
    %c0_43 = arith.constant 0 : index
    %55 = vector.load %arg15[%c0_42, %c0_43] : memref<1x64xf32, #tpu.memory_space<vmem>>, vector<1x64xf32>
    %56 = vector.broadcast %55 : vector<1x64xf32> to vector<4x64xf32>
    %57 = arith.addf %54, %56 : vector<4x64xf32>
    %cst_44 = arith.constant 0.000000e+00 : f32
    %58 = vector.broadcast %cst_44 : f32 to vector<4x64xf32>
    %59 = arith.cmpf oge, %57, %58 : vector<4x64xf32>
    %cst_45 = arith.constant 0.00999999977 : f32
    %60 = vector.broadcast %cst_45 : f32 to vector<4x64xf32>
    %61 = arith.mulf %60, %57 : vector<4x64xf32>
    %62 = arith.select %59, %57, %61 : vector<4x64xi1>, vector<4x64xf32>
    %c0_46 = arith.constant 0 : index
    %c0_47 = arith.constant 0 : index
    %63 = vector.load %arg16[%c0_46, %c0_47] : memref<64x64xf32, #tpu.memory_space<vmem>>, vector<64x64xf32>
    %cst_48 = arith.constant dense<0.000000e+00> : vector<4x64xf32>
    %64 = tpu.matmul %62, %63, %cst_48 {dimension_numbers = #tpu.dot_dimension_numbers<[1], [0], [0], [1], [0, 0, 1, 1], [], []>} : vector<4x64xf32>, vector<64x64xf32>, vector<4x64xf32> -> vector<4x64xf32>
    %c0_49 = arith.constant 0 : index
    %c0_50 = arith.constant 0 : index
    %65 = vector.load %arg17[%c0_49, %c0_50] : memref<1x64xf32, #tpu.memory_space<vmem>>, vector<1x64xf32>
    %66 = vector.broadcast %65 : vector<1x64xf32> to vector<4x64xf32>
    %67 = arith.addf %64, %66 : vector<4x64xf32>
    %68 = arith.addf %47, %67 : vector<4x64xf32>
    %c0_51 = arith.constant 0 : index
    %c0_52 = arith.constant 0 : index
    %69 = vector.load %arg18[%c0_51, %c0_52] : memref<64x64xf32, #tpu.memory_space<vmem>>, vector<64x64xf32>
    %cst_53 = arith.constant dense<0.000000e+00> : vector<4x64xf32>
    %70 = tpu.matmul %68, %69, %cst_53 {dimension_numbers = #tpu.dot_dimension_numbers<[1], [0], [0], [1], [0, 0, 1, 1], [], []>} : vector<4x64xf32>, vector<64x64xf32>, vector<4x64xf32> -> vector<4x64xf32>
    %c0_54 = arith.constant 0 : index
    %c0_55 = arith.constant 0 : index
    %71 = vector.load %arg19[%c0_54, %c0_55] : memref<1x64xf32, #tpu.memory_space<vmem>>, vector<1x64xf32>
    %72 = vector.broadcast %71 : vector<1x64xf32> to vector<4x64xf32>
    %73 = arith.addf %70, %72 : vector<4x64xf32>
    %c0_56 = arith.constant 0 : index
    %c0_57 = arith.constant 0 : index
    %74 = vector.load %arg20[%c0_56, %c0_57] : memref<64x64xf32, #tpu.memory_space<vmem>>, vector<64x64xf32>
    %cst_58 = arith.constant dense<0.000000e+00> : vector<4x64xf32>
    %75 = tpu.matmul %73, %74, %cst_58 {dimension_numbers = #tpu.dot_dimension_numbers<[1], [0], [0], [1], [0, 0, 1, 1], [], []>} : vector<4x64xf32>, vector<64x64xf32>, vector<4x64xf32> -> vector<4x64xf32>
    %c0_59 = arith.constant 0 : index
    %c0_60 = arith.constant 0 : index
    %76 = vector.load %arg21[%c0_59, %c0_60] : memref<1x64xf32, #tpu.memory_space<vmem>>, vector<1x64xf32>
    %77 = vector.broadcast %76 : vector<1x64xf32> to vector<4x64xf32>
    %78 = arith.addf %75, %77 : vector<4x64xf32>
    %c0_61 = arith.constant 0 : index
    %c0_62 = arith.constant 0 : index
    %79 = vector.load %arg22[%c0_61, %c0_62] : memref<64x64xf32, #tpu.memory_space<vmem>>, vector<64x64xf32>
    %cst_63 = arith.constant dense<0.000000e+00> : vector<4x64xf32>
    %80 = tpu.matmul %78, %79, %cst_63 {dimension_numbers = #tpu.dot_dimension_numbers<[1], [0], [0], [1], [0, 0, 1, 1], [], []>} : vector<4x64xf32>, vector<64x64xf32>, vector<4x64xf32> -> vector<4x64xf32>
    %c0_64 = arith.constant 0 : index
    %c0_65 = arith.constant 0 : index
    %81 = vector.load %arg23[%c0_64, %c0_65] : memref<1x64xf32, #tpu.memory_space<vmem>>, vector<1x64xf32>
    %82 = vector.broadcast %81 : vector<1x64xf32> to vector<4x64xf32>
    %83 = arith.addf %80, %82 : vector<4x64xf32>
    %c0_66 = arith.constant 0 : index
    %c0_67 = arith.constant 0 : index
    %84 = vector.load %arg24[%c0_66, %c0_67] : memref<4x64xf32, #tpu.memory_space<vmem>>, vector<4x64xf32>
    tpu.vector_store %arg24[%c0_66, %c0_67], %83 {strides = array<i32>} : memref<4x64xf32, #tpu.memory_space<vmem>>, vector<4x64xf32>,
    return
  }
  func.func @transform_0(%arg0: i32) -> (i32, i32) {
    %c0_i32 = arith.constant 0 : i32
    %c0_i32_0 = arith.constant 0 : i32
    %c0_i32_1 = arith.constant 0 : i32
    return %c0_i32, %c0_i32_0 : i32, i32
  }
  func.func @transform_1(%arg0: i32) -> (i32, i32) {
    %c0_i32 = arith.constant 0 : i32
    %c0_i32_0 = arith.constant 0 : i32
    %c0_i32_1 = arith.constant 0 : i32
    return %c0_i32, %c0_i32_0 : i32, i32
  }
  func.func @transform_2(%arg0: i32) -> (i32, i32) {
    %c0_i32 = arith.constant 0 : i32
    %c0_i32_0 = arith.constant 0 : i32
    %c0_i32_1 = arith.constant 0 : i32
    return %c0_i32, %c0_i32_0 : i32, i32
  }
  func.func @transform_3(%arg0: i32) -> (i32, i32) {
    %c0_i32 = arith.constant 0 : i32
    %c0_i32_0 = arith.constant 0 : i32
    %c0_i32_1 = arith.constant 0 : i32
    return %c0_i32, %c0_i32_0 : i32, i32
  }
  func.func @transform_4(%arg0: i32) -> (i32, i32) {
    %c0_i32 = arith.constant 0 : i32
    %c0_i32_0 = arith.constant 0 : i32
    %c0_i32_1 = arith.constant 0 : i32
    return %c0_i32, %c0_i32_0 : i32, i32
  }
  func.func @transform_5(%arg0: i32) -> (i32, i32) {
    %c0_i32 = arith.constant 0 : i32
    %c0_i32_0 = arith.constant 0 : i32
    %c0_i32_1 = arith.constant 0 : i32
    return %c0_i32, %c0_i32_0 : i32, i32
  }
  func.func @transform_6(%arg0: i32) -> (i32, i32) {
    %c0_i32 = arith.constant 0 : i32
    %c0_i32_0 = arith.constant 0 : i32
    %c0_i32_1 = arith.constant 0 : i32
    return %c0_i32, %c0_i32_0 : i32, i32
  }
  func.func @transform_7(%arg0: i32) -> (i32, i32) {
    %c0_i32 = arith.constant 0 : i32
    %c0_i32_0 = arith.constant 0 : i32
    %c0_i32_1 = arith.constant 0 : i32
    return %c0_i32, %c0_i32_0 : i32, i32
  }
  func.func @transform_8(%arg0: i32) -> (i32, i32) {
    %c0_i32 = arith.constant 0 : i32
    %c0_i32_0 = arith.constant 0 : i32
    %c0_i32_1 = arith.constant 0 : i32
    return %c0_i32, %c0_i32_0 : i32, i32
  }
  func.func @transform_9(%arg0: i32) -> (i32, i32) {
    %c0_i32 = arith.constant 0 : i32
    %c0_i32_0 = arith.constant 0 : i32
    %c0_i32_1 = arith.constant 0 : i32
    return %c0_i32, %c0_i32_0 : i32, i32
  }
  func.func @transform_10(%arg0: i32) -> (i32, i32) {
    %c0_i32 = arith.constant 0 : i32
    %c0_i32_0 = arith.constant 0 : i32
    %c0_i32_1 = arith.constant 0 : i32
    return %c0_i32, %c0_i32_0 : i32, i32
  }
  func.func @transform_11(%arg0: i32) -> (i32, i32) {
    %c0_i32 = arith.constant 0 : i32
    %c0_i32_0 = arith.constant 0 : i32
    %c0_i32_1 = arith.constant 0 : i32
    return %c0_i32, %c0_i32_0 : i32, i32
  }
  func.func @transform_12(%arg0: i32) -> (i32, i32) {
    %c0_i32 = arith.constant 0 : i32
    %c0_i32_0 = arith.constant 0 : i32
    %c0_i32_1 = arith.constant 0 : i32
    return %c0_i32, %c0_i32_0 : i32, i32
  }
  func.func @transform_13(%arg0: i32) -> (i32, i32) {
    %c0_i32 = arith.constant 0 : i32
    %c0_i32_0 = arith.constant 0 : i32
    %c0_i32_1 = arith.constant 0 : i32
    return %c0_i32, %c0_i32_0 : i32, i32
  }
  func.func @transform_14(%arg0: i32) -> (i32, i32) {
    %c0_i32 = arith.constant 0 : i32
    %c0_i32_0 = arith.constant 0 : i32
    %c0_i32_1 = arith.constant 0 : i32
    return %c0_i32, %c0_i32_0 : i32, i32
  }
  func.func @transform_15(%arg0: i32) -> (i32, i32) {
    %c0_i32 = arith.constant 0 : i32
    %c0_i32_0 = arith.constant 0 : i32
    %c0_i32_1 = arith.constant 0 : i32
    return %c0_i32, %c0_i32_0 : i32, i32
  }
  func.func @transform_16(%arg0: i32) -> (i32, i32) {
    %c0_i32 = arith.constant 0 : i32
    %c0_i32_0 = arith.constant 0 : i32
    %c0_i32_1 = arith.constant 0 : i32
    return %c0_i32, %c0_i32_0 : i32, i32
  }
  func.func @transform_17(%arg0: i32) -> (i32, i32) {
    %c0_i32 = arith.constant 0 : i32
    %c0_i32_0 = arith.constant 0 : i32
    %c0_i32_1 = arith.constant 0 : i32
    return %c0_i32, %c0_i32_0 : i32, i32
  }
  func.func @transform_18(%arg0: i32) -> (i32, i32) {
    %c0_i32 = arith.constant 0 : i32
    %c0_i32_0 = arith.constant 0 : i32
    %c0_i32_1 = arith.constant 0 : i32
    return %c0_i32, %c0_i32_0 : i32, i32
  }
  func.func @transform_19(%arg0: i32) -> (i32, i32) {
    %c0_i32 = arith.constant 0 : i32
    %c0_i32_0 = arith.constant 0 : i32
    %c0_i32_1 = arith.constant 0 : i32
    return %c0_i32, %c0_i32_0 : i32, i32
  }
  func.func @transform_20(%arg0: i32) -> (i32, i32) {
    %c0_i32 = arith.constant 0 : i32
    %c0_i32_0 = arith.constant 0 : i32
    %c0_i32_1 = arith.constant 0 : i32
    return %c0_i32, %c0_i32_0 : i32, i32
  }
  func.func @transform_21(%arg0: i32) -> (i32, i32) {
    %c0_i32 = arith.constant 0 : i32
    %c0_i32_0 = arith.constant 0 : i32
    %c0_i32_1 = arith.constant 0 : i32
    return %c0_i32, %c0_i32_0 : i32, i32
  }
  func.func @transform_22(%arg0: i32) -> (i32, i32) {
    %c0_i32 = arith.constant 0 : i32
    %c0_i32_0 = arith.constant 0 : i32
    %c0_i32_1 = arith.constant 0 : i32
    return %c0_i32, %c0_i32_0 : i32, i32
  }
  func.func @transform_23(%arg0: i32) -> (i32, i32) {
    %c0_i32 = arith.constant 0 : i32
    %c0_i32_0 = arith.constant 0 : i32
    %c0_i32_1 = arith.constant 0 : i32
    return %c0_i32, %c0_i32_0 : i32, i32
  }
}

</mosaic_0001>

<llo_original>
// kernel: decoder_forward.1
$region0: #{decoder_forward.1}
  #allocation0 [shape = 'u32[]', space=smem, size = 0x4, offset = 0x4, fixed_abs, tag = 'smem constant byte address 0x4 - core index']
  #allocation1 [shape = 'u32[144,128]{1,0:T(1,128)}', space=vmem, size = 0x12000, scoped, tag = 'internal scratch']
  %s0 = inlined_call_operand.vmem [shape: f32[4,16], index: 0, kind: input, shape index: {}]
  %s1 = inlined_call_operand.hbm [shape: f32[16,128], index: 1, kind: input, shape index: {}]
  %s2 = inlined_call_operand.vmem [shape: f32[1,128], index: 2, kind: input, shape index: {}]
  %s3 = inlined_call_operand.vmem [shape: f32[128,128], index: 3, kind: input, shape index: {}]
  %s4 = inlined_call_operand.vmem [shape: f32[1,128], index: 4, kind: input, shape index: {}]
  %s5 = inlined_call_operand.hbm [shape: f32[128,128], index: 5, kind: input, shape index: {}]
  %s6 = inlined_call_operand.vmem [shape: f32[1,128], index: 6, kind: input, shape index: {}]
  %s7 = inlined_call_operand.vmem [shape: f32[128,64], index: 7, kind: input, shape index: {}]
  %s8 = inlined_call_operand.vmem [shape: f32[1,64], index: 8, kind: input, shape index: {}]
  %s9 = inlined_call_operand.vmem [shape: f32[64,64], index: 9, kind: input, shape index: {}]
  %s10 = inlined_call_operand.vmem [shape: f32[1,64], index: 10, kind: input, shape index: {}]
  %s11 = inlined_call_operand.hbm [shape: f32[64,64], index: 11, kind: input, shape index: {}]
  %s12 = inlined_call_operand.vmem [shape: f32[1,64], index: 12, kind: input, shape index: {}]
  %s13 = inlined_call_operand.hbm [shape: f32[64,64], index: 13, kind: input, shape index: {}]
  %s14 = inlined_call_operand.vmem [shape: f32[1,64], index: 14, kind: input, shape index: {}]
  %s15 = inlined_call_operand.hbm [shape: f32[64,64], index: 15, kind: input, shape index: {}]
  %s16 = inlined_call_operand.vmem [shape: f32[1,64], index: 16, kind: input, shape index: {}]
  %s17 = inlined_call_operand.hbm [shape: f32[64,64], index: 17, kind: input, shape index: {}]
  %s18 = inlined_call_operand.vmem [shape: f32[1,64], index: 18, kind: input, shape index: {}]
  %s19 = inlined_call_operand.hbm [shape: f32[64,64], index: 19, kind: input, shape index: {}]
  %s20 = inlined_call_operand.vmem [shape: f32[1,64], index: 20, kind: input, shape index: {}]
  %s21 = inlined_call_operand.hbm [shape: f32[64,64], index: 21, kind: input, shape index: {}]
  %s22 = inlined_call_operand.vmem [shape: f32[1,64], index: 22, kind: input, shape index: {}]
  %s23 = inlined_call_operand.vmem [shape: f32[4,64], index: 23, kind: output, shape index: {}]
  %s24 = sld [smem:[#allocation0]]
  $region134: #{decoder_forward.1} parent=0
    _
  %s26 = ssub.s32 1, %s24
  %s27 = scalar_select 0, %s26, %s24
  $region1: #{decoder_forward.1} parent=0
    #allocation2 [shape = 'u8[8192]{0}', space=vmem, size = 0x2000, scoped, tag = 'input window, operand 1, single buffered']
    #allocation3 [shape = 's32[1]{0}', space=sflag, size = 0x4, scoped, tag = 'scoped memory for decoder_forward.1']
    #allocation4 [shape = 'u8[65536]{0}', space=vmem, size = 0x10000, scoped, tag = 'input window, operand 5, single buffered']
    #allocation5 [shape = 's32[1]{0}', space=sflag, size = 0x4, scoped, tag = 'scoped memory for decoder_forward.1']
    #allocation6 [shape = 'u8[32768]{0}', space=vmem, size = 0x8000, scoped, tag = 'input window, operand 11, single buffered']
    #allocation7 [shape = 'u8[32768]{0}', space=vmem, size = 0x8000, scoped, tag = 'input window, operand 13, single buffered']
    #allocation8 [shape = 's32[1]{0}', space=sflag, size = 0x4, scoped, tag = 'scoped memory for decoder_forward.1']
    #allocation9 [shape = 'u8[32768]{0}', space=vmem, size = 0x8000, scoped, tag = 'input window, operand 15, single buffered']
    #allocation10 [shape = 'u8[32768]{0}', space=vmem, size = 0x8000, scoped, tag = 'input window, operand 17, single buffered']
    #allocation11 [shape = 's32[1]{0}', space=sflag, size = 0x4, scoped, tag = 'scoped memory for decoder_forward.1']
    #allocation12 [shape = 'u8[32768]{0}', space=vmem, size = 0x8000, scoped, tag = 'input window, operand 19, single buffered']
    #allocation13 [shape = 'u8[32768]{0}', space=vmem, size = 0x8000, scoped, tag = 'input window, operand 21, single buffered']
    #allocation14 [shape = 's32[1]{0}', space=sflag, size = 0x4, scoped, tag = 'scoped memory for decoder_forward.1']
    %28 = vsyncpa [#allocation3], 0
    %29 = vsyncpa [#allocation5], 0
    %30 = vsyncpa [#allocation8], 0
    %31 = vsyncpa [#allocation11], 0
    %32 = vsyncpa [#allocation14], 0
    // Predicated region
    $region2: #{decoder_forward.1} parent=1 // pred_check
      _
    $region3: #{decoder_forward.1} parent=1 // pred_check_branch
      %34 = sbr.rel (0) target = $region5
    $region4: #{decoder_forward.1} parent=1 // pred_region
      _
    $region5: #{decoder_forward.1} parent=1 // pred_fallthru
      _
    // Predicated region
    $region6: #{decoder_forward.1} parent=1 // pred_check
      _
    $region7: #{decoder_forward.1} parent=1 // pred_check_branch
      %36 = sbr.rel (0) target = $region9
    $region8: #{decoder_forward.1} parent=1 // pred_region
      %s38 = ssub.s32 256, 256
      %39 = vsyncadd [#allocation3], %s38
      %s40 = sshll.u32 [#allocation2], 4
      %s41 = int_to_ptr.vmem [resolvable:$true] %s40
      %46 = dma.hbm_to_vmem [thread:$0]  %s1, 256, %s41, [#allocation3], 128, 128, 8
    $region9: #{decoder_forward.1} parent=1 // pred_fallthru
      _
    // Predicated region
    $region10: #{decoder_forward.1} parent=1 // pred_check
      _
    $region11: #{decoder_forward.1} parent=1 // pred_check_branch
      %48 = sbr.rel (0) target = $region13
    $region12: #{decoder_forward.1} parent=1 // pred_region
      _
    $region13: #{decoder_forward.1} parent=1 // pred_fallthru
      _
    // Predicated region
    $region14: #{decoder_forward.1} parent=1 // pred_check
      _
    $region15: #{decoder_forward.1} parent=1 // pred_check_branch
      %50 = sbr.rel (0) target = $region17
    $region16: #{decoder_forward.1} parent=1 // pred_region
      _
    $region17: #{decoder_forward.1} parent=1 // pred_fallthru
      _
    // Predicated region
    $region18: #{decoder_forward.1} parent=1 // pred_check
      _
    $region19: #{decoder_forward.1} parent=1 // pred_check_branch
      %52 = sbr.rel (0) target = $region21
    $region20: #{decoder_forward.1} parent=1 // pred_region
      _
    $region21: #{decoder_forward.1} parent=1 // pred_fallthru
      _
    // Predicated region
    $region22: #{decoder_forward.1} parent=1 // pred_check
      _
    $region23: #{decoder_forward.1} parent=1 // pred_check_branch
      %54 = sbr.rel (0) target = $region25
    $region24: #{decoder_forward.1} parent=1 // pred_region
      %s56 = ssub.s32 2048, 2048
      %57 = vsyncadd [#allocation5], %s56
      %s58 = sshll.u32 [#allocation4], 4
      %s59 = int_to_ptr.vmem [resolvable:$true] %s58
      %64 = dma.hbm_to_vmem [thread:$0]  %s5, 2048, %s59, [#allocation5], 128, 128, 8
    $region25: #{decoder_forward.1} parent=1 // pred_fallthru
      _
    // Predicated region
    $region26: #{decoder_forward.1} parent=1 // pred_check
      _
    $region27: #{decoder_forward.1} parent=1 // pred_check_branch
      %66 = sbr.rel (0) target = $region29
    $region28: #{decoder_forward.1} parent=1 // pred_region
      _
    $region29: #{decoder_forward.1} parent=1 // pred_fallthru
      _
    // Predicated region
    $region30: #{decoder_forward.1} parent=1 // pred_check
      _
    $region31: #{decoder_forward.1} parent=1 // pred_check_branch
      %68 = sbr.rel (0) target = $region33
    $region32: #{decoder_forward.1} parent=1 // pred_region
      _
    $region33: #{decoder_forward.1} parent=1 // pred_fallthru
      _
    // Predicated region
    $region34: #{decoder_forward.1} parent=1 // pred_check
      _
    $region35: #{decoder_forward.1} parent=1 // pred_check_branch
      %70 = sbr.rel (0) target = $region37
    $region36: #{decoder_forward.1} parent=1 // pred_region
      _
    $region37: #{decoder_forward.1} parent=1 // pred_fallthru
      _
    // Predicated region
    $region38: #{decoder_forward.1} parent=1 // pred_check
      _
    $region39: #{decoder_forward.1} parent=1 // pred_check_branch
      %72 = sbr.rel (0) target = $region41
    $region40: #{decoder_forward.1} parent=1 // pred_region
      _
    $region41: #{decoder_forward.1} parent=1 // pred_fallthru
      _
    // Predicated region
    $region42: #{decoder_forward.1} parent=1 // pred_check
      _
    $region43: #{decoder_forward.1} parent=1 // pred_check_branch
      %74 = sbr.rel (0) target = $region45
    $region44: #{decoder_forward.1} parent=1 // pred_region
      _
    $region45: #{decoder_forward.1} parent=1 // pred_fallthru
      _
    // Predicated region
    $region46: #{decoder_forward.1} parent=1 // pred_check
      _
    $region47: #{decoder_forward.1} parent=1 // pred_check_branch
      %76 = sbr.rel (0) target = $region49
    $region48: #{decoder_forward.1} parent=1 // pred_region
      %s78 = ssub.s32 1024, 1024
      %79 = vsyncadd [#allocation5], %s78
      %s80 = sshll.u32 [#allocation6], 4
      %s81 = int_to_ptr.vmem [resolvable:$true] %s80
      %86 = dma.hbm_to_vmem [thread:$0]  %s11, 1024, %s81, [#allocation5], 128, 128, 8
    $region49: #{decoder_forward.1} parent=1 // pred_fallthru
      _
    // Predicated region
    $region50: #{decoder_forward.1} parent=1 // pred_check
      _
    $region51: #{decoder_forward.1} parent=1 // pred_check_branch
      %88 = sbr.rel (0) target = $region53
    $region52: #{decoder_forward.1} parent=1 // pred_region
      _
    $region53: #{decoder_forward.1} parent=1 // pred_fallthru
      _
    // Predicated region
    $region54: #{decoder_forward.1} parent=1 // pred_check
      _
    $region55: #{decoder_forward.1} parent=1 // pred_check_branch
      %90 = sbr.rel (0) target = $region57
    $region56: #{decoder_forward.1} parent=1 // pred_region
      %s92 = ssub.s32 1024, 1024
      %93 = vsyncadd [#allocation8], %s92
      %s94 = sshll.u32 [#allocation7], 4
      %s95 = int_to_ptr.vmem [resolvable:$true] %s94
      %100 = dma.hbm_to_vmem [thread:$0]  %s13, 1024, %s95, [#allocation8], 128, 128, 8
    $region57: #{decoder_forward.1} parent=1 // pred_fallthru
      _
    // Predicated region
    $region58: #{decoder_forward.1} parent=1 // pred_check
      _
    $region59: #{decoder_forward.1} parent=1 // pred_check_branch
      %102 = sbr.rel (0) target = $region61
    $region60: #{decoder_forward.1} parent=1 // pred_region
      _
    $region61: #{decoder_forward.1} parent=1 // pred_fallthru
      _
    // Predicated region
    $region62: #{decoder_forward.1} parent=1 // pred_check
      _
    $region63: #{decoder_forward.1} parent=1 // pred_check_branch
      %104 = sbr.rel (0) target = $region65
    $region64: #{decoder_forward.1} parent=1 // pred_region
      %s106 = ssub.s32 1024, 1024
      %107 = vsyncadd [#allocation8], %s106
      %s108 = sshll.u32 [#allocation9], 4
      %s109 = int_to_ptr.vmem [resolvable:$true] %s108
      %114 = dma.hbm_to_vmem [thread:$0]  %s15, 1024, %s109, [#allocation8], 128, 128, 8
    $region65: #{decoder_forward.1} parent=1 // pred_fallthru
      _
    // Predicated region
    $region66: #{decoder_forward.1} parent=1 // pred_check
      _
    $region67: #{decoder_forward.1} parent=1 // pred_check_branch
      %116 = sbr.rel (0) target = $region69
    $region68: #{decoder_forward.1} parent=1 // pred_region
      _
    $region69: #{decoder_forward.1} parent=1 // pred_fallthru
      _
    // Predicated region
    $region70: #{decoder_forward.1} parent=1 // pred_check
      _
    $region71: #{decoder_forward.1} parent=1 // pred_check_branch
      %118 = sbr.rel (0) target = $region73
    $region72: #{decoder_forward.1} parent=1 // pred_region
      %s120 = ssub.s32 1024, 1024
      %121 = vsyncadd [#allocation11], %s120
      %s122 = sshll.u32 [#allocation10], 4
      %s123 = int_to_ptr.vmem [resolvable:$true] %s122
      %128 = dma.hbm_to_vmem [thread:$0]  %s17, 1024, %s123, [#allocation11], 128, 128, 8
    $region73: #{decoder_forward.1} parent=1 // pred_fallthru
      _
    // Predicated region
    $region74: #{decoder_forward.1} parent=1 // pred_check
      _
    $region75: #{decoder_forward.1} parent=1 // pred_check_branch
      %130 = sbr.rel (0) target = $region77
    $region76: #{decoder_forward.1} parent=1 // pred_region
      _
    $region77: #{decoder_forward.1} parent=1 // pred_fallthru
      _
    // Predicated region
    $region78: #{decoder_forward.1} parent=1 // pred_check
      _
    $region79: #{decoder_forward.1} parent=1 // pred_check_branch
      %132 = sbr.rel (0) target = $region81
    $region80: #{decoder_forward.1} parent=1 // pred_region
      %s134 = ssub.s32 1024, 1024
      %135 = vsyncadd [#allocation11], %s134
      %s136 = sshll.u32 [#allocation12], 4
      %s137 = int_to_ptr.vmem [resolvable:$true] %s136
      %142 = dma.hbm_to_vmem [thread:$0]  %s19, 1024, %s137, [#allocation11], 128, 128, 8
    $region81: #{decoder_forward.1} parent=1 // pred_fallthru
      _
    // Predicated region
    $region82: #{decoder_forward.1} parent=1 // pred_check
      _
    $region83: #{decoder_forward.1} parent=1 // pred_check_branch
      %144 = sbr.rel (0) target = $region85
    $region84: #{decoder_forward.1} parent=1 // pred_region
      _
    $region85: #{decoder_forward.1} parent=1 // pred_fallthru
      _
    // Predicated region
    $region86: #{decoder_forward.1} parent=1 // pred_check
      _
    $region87: #{decoder_forward.1} parent=1 // pred_check_branch
      %146 = sbr.rel (0) target = $region89
    $region88: #{decoder_forward.1} parent=1 // pred_region
      %s148 = ssub.s32 1024, 1024
      %149 = vsyncadd [#allocation14], %s148
      %s150 = sshll.u32 [#allocation13], 4
      %s151 = int_to_ptr.vmem [resolvable:$true] %s150
      %156 = dma.hbm_to_vmem [thread:$0]  %s21, 1024, %s151, [#allocation14], 128, 128, 8
    $region89: #{decoder_forward.1} parent=1 // pred_fallthru
      _
    // Predicated region
    $region90: #{decoder_forward.1} parent=1 // pred_check
      _
    $region91: #{decoder_forward.1} parent=1 // pred_check_branch
      %158 = sbr.rel (0) target = $region93
    $region92: #{decoder_forward.1} parent=1 // pred_region
      _
    $region93: #{decoder_forward.1} parent=1 // pred_fallthru
      _
    // Predicated region
    $region94: #{decoder_forward.1} parent=1 // pred_check
      _
    $region95: #{decoder_forward.1} parent=1 // pred_check_branch
      %160 = sbr.rel (0) target = $region97
    $region96: #{decoder_forward.1} parent=1 // pred_region
      %161 = dma.done [#allocation3], 256
    $region97: #{decoder_forward.1} parent=1 // pred_fallthru
      _
    // Predicated region
    $region98: #{decoder_forward.1} parent=1 // pred_check
      _
    $region99: #{decoder_forward.1} parent=1 // pred_check_branch
      %163 = sbr.rel (0) target = $region101
    $region100: #{decoder_forward.1} parent=1 // pred_region
      %164 = dma.done [#allocation5], 2048
    $region101: #{decoder_forward.1} parent=1 // pred_fallthru
      _
    // Predicated region
    $region102: #{decoder_forward.1} parent=1 // pred_check
      _
    $region103: #{decoder_forward.1} parent=1 // pred_check_branch
      %166 = sbr.rel (0) target = $region105
    $region104: #{decoder_forward.1} parent=1 // pred_region
      %167 = dma.done [#allocation5], 1024
    $region105: #{decoder_forward.1} parent=1 // pred_fallthru
      _
    // Predicated region
    $region106: #{decoder_forward.1} parent=1 // pred_check
      _
    $region107: #{decoder_forward.1} parent=1 // pred_check_branch
      %169 = sbr.rel (0) target = $region109
    $region108: #{decoder_forward.1} parent=1 // pred_region
      %170 = dma.done [#allocation8], 1024
    $region109: #{decoder_forward.1} parent=1 // pred_fallthru
      _
    // Predicated region
    $region110: #{decoder_forward.1} parent=1 // pred_check
      _
    $region111: #{decoder_forward.1} parent=1 // pred_check_branch
      %172 = sbr.rel (0) target = $region113
    $region112: #{decoder_forward.1} parent=1 // pred_region
      %173 = dma.done [#allocation8], 1024
    $region113: #{decoder_forward.1} parent=1 // pred_fallthru
      _
    // Predicated region
    $region114: #{decoder_forward.1} parent=1 // pred_check
      _
    $region115: #{decoder_forward.1} parent=1 // pred_check_branch
      %175 = sbr.rel (0) target = $region117
    $region116: #{decoder_forward.1} parent=1 // pred_region
      %176 = dma.done [#allocation11], 1024
    $region117: #{decoder_forward.1} parent=1 // pred_fallthru
      _
    // Predicated region
    $region118: #{decoder_forward.1} parent=1 // pred_check
      _
    $region119: #{decoder_forward.1} parent=1 // pred_check_branch
      %178 = sbr.rel (0) target = $region121
    $region120: #{decoder_forward.1} parent=1 // pred_region
      %179 = dma.done [#allocation11], 1024
    $region121: #{decoder_forward.1} parent=1 // pred_fallthru
      _
    // Predicated region
    $region122: #{decoder_forward.1} parent=1 // pred_check
      _
    $region123: #{decoder_forward.1} parent=1 // pred_check_branch
      %181 = sbr.rel (0) target = $region125
    $region124: #{decoder_forward.1} parent=1 // pred_region
      %182 = dma.done [#allocation14], 1024
    $region125: #{decoder_forward.1} parent=1 // pred_fallthru
      _
    %v183 = vld [vmem:[%s0] sm:$0xf]
    %v184 = vld [vmem:[#allocation2] sm:$0xff]
    %v185 = vld [vmem:[#allocation2 + $0x8] sm:$0xff]
    %v186 = vld [vmem:[%s2] sm:$0x1]
    %v188 = vlaneseq
    %v189 = vshrl.u32 %v188, 7
    %v190 = vsub.s32 0, %v189
    %v191 = vrot.slane %v186, %v190
    %vm193 = vcmask 130048
    %v195 = vsel %vm193, %v183, 0
    %197 = vmatprep.subr.mxu0 0.0
    %198 = vmatpush1.msra.mxu0 0.0
    %199 = vmatprep.subr.mxu0 0.0
    %200 = vmatpush1.msra.mxu0 0.0
    %201 = vmatprep.subr.mxu0 0.0
    %202 = vmatpush1.msra.mxu0 0.0
    %203 = vmatprep.subr.mxu0 0.0
    %204 = vmatpush1.msra.mxu0 0.0
    %205 = vmatprep.subr.mxu0 0.0
    %206 = vmatpush1.msra.mxu0 0.0
    %207 = vmatprep.subr.mxu0 0.0
    %208 = vmatpush1.msra.mxu0 0.0
    %209 = vmatprep.subr.mxu0 0.0
    %210 = vmatpush1.msra.mxu0 0.0
    %211 = vmatprep.subr.mxu0 0.0
    %212 = vmatpush1.msra.mxu0 0.0
    %213 = vmatprep.subr.mxu0 0.0
    %214 = vmatpush1.msra.mxu0 0.0
    %215 = vmatprep.subr.mxu0 0.0
    %216 = vmatpush1.msra.mxu0 0.0
    %217 = vmatprep.subr.mxu0 0.0
    %218 = vmatpush1.msra.mxu0 0.0
    %219 = vmatprep.subr.mxu0 0.0
    %220 = vmatpush1.msra.mxu0 0.0
    %221 = vmatprep.subr.mxu0 0.0
    %222 = vmatpush1.msra.mxu0 0.0
    %223 = vmatprep.subr.mxu0 0.0
    %224 = vmatpush1.msra.mxu0 0.0
    %225 = vmatprep.subr.mxu0 0.0
    %226 = vmatpush1.msra.mxu0 %v185
    %227 = vmatprep.subr.mxu0 0.0
    %228 = vmatpush1.msra.mxu0 %v184
    %229 = vmatprep.subr.mxu0 0.0
    %230 = vmatpush2.msra.mxu0 0.0
    %231 = vmatprep.subr.mxu0 0.0
    %232 = vmatpush2.msra.mxu0 0.0
    %233 = vmatprep.subr.mxu0 0.0
    %234 = vmatpush2.msra.mxu0 0.0
    %235 = vmatprep.subr.mxu0 0.0
    %236 = vmatpush2.msra.mxu0 0.0
    %237 = vmatprep.subr.mxu0 0.0
    %238 = vmatpush2.msra.mxu0 0.0
    %239 = vmatprep.subr.mxu0 0.0
    %240 = vmatpush2.msra.mxu0 0.0
    %241 = vmatprep.subr.mxu0 0.0
    %242 = vmatpush2.msra.mxu0 0.0
    %243 = vmatprep.subr.mxu0 0.0
    %244 = vmatpush2.msra.mxu0 0.0
    %245 = vmatprep.subr.mxu0 0.0
    %246 = vmatpush2.msra.mxu0 0.0
    %247 = vmatprep.subr.mxu0 0.0
    %248 = vmatpush2.msra.mxu0 0.0
    %249 = vmatprep.subr.mxu0 0.0
    %250 = vmatpush2.msra.mxu0 0.0
    %251 = vmatprep.subr.mxu0 0.0
    %252 = vmatpush2.msra.mxu0 0.0
    %253 = vmatprep.subr.mxu0 0.0
    %254 = vmatpush2.msra.mxu0 0.0
    %255 = vmatprep.subr.mxu0 0.0
    %256 = vmatpush2.msra.mxu0 0.0
    %257 = vmatprep.subr.mxu0 0.0
    %258 = vmatpush2.msra.mxu0 0.0
    %259 = vmatprep.subr.mxu0 0.0
    %260 = vmatpush2.msra.mxu0 0.0
    %261 = vmatprep.mubr.f32.mxu0 0.0
    %262 = vmatmul.mubr.f32.gmra.mxu0 %v195
    %v263 = vpop.f32.mrf.mxu0
    %v264 = vadd.f32 %v191, %v263
    %v265 = vpop.f32.mrf.mxu0
    %266 = vdwg.mxu0
    %v267 = vld [vmem:[%s3] sm:$0xff]
    %v268 = vld [vmem:[%s3 + $0x8] sm:$0xff]
    %v269 = vld [vmem:[%s3 + $0x10] sm:$0xff]
    %v270 = vld [vmem:[%s3 + $0x18] sm:$0xff]
    %v271 = vld [vmem:[%s3 + $0x20] sm:$0xff]
    %v272 = vld [vmem:[%s3 + $0x28] sm:$0xff]
    %v273 = vld [vmem:[%s3 + $0x30] sm:$0xff]
    %v274 = vld [vmem:[%s3 + $0x38] sm:$0xff]
    %v275 = vld [vmem:[%s3 + $0x40] sm:$0xff]
    %v276 = vld [vmem:[%s3 + $0x48] sm:$0xff]
    %v277 = vld [vmem:[%s3 + $0x50] sm:$0xff]
    %v278 = vld [vmem:[%s3 + $0x58] sm:$0xff]
    %v279 = vld [vmem:[%s3 + $0x60] sm:$0xff]
    %v280 = vld [vmem:[%s3 + $0x68] sm:$0xff]
    %v281 = vld [vmem:[%s3 + $0x70] sm:$0xff]
    %v282 = vld [vmem:[%s3 + $0x78] sm:$0xff]
    %v283 = vld [vmem:[%s4] sm:$0x1]
    %v285 = vlaneseq
    %v286 = vshrl.u32 %v285, 7
    %v287 = vsub.s32 0, %v286
    %v288 = vrot.slane %v283, %v287
    %290 = vmatprep.subr.mxu0 0.0
    %291 = vmatpush1.msra.mxu0 %v282
    %292 = vmatprep.subr.mxu0 0.0
    %293 = vmatpush1.msra.mxu0 %v281
    %294 = vmatprep.subr.mxu0 0.0
    %295 = vmatpush1.msra.mxu0 %v280
    %296 = vmatprep.subr.mxu0 0.0
    %297 = vmatpush1.msra.mxu0 %v279
    %298 = vmatprep.subr.mxu0 0.0
    %299 = vmatpush1.msra.mxu0 %v278
    %300 = vmatprep.subr.mxu0 0.0
    %301 = vmatpush1.msra.mxu0 %v277
    %302 = vmatprep.subr.mxu0 0.0
    %303 = vmatpush1.msra.mxu0 %v276
    %304 = vmatprep.subr.mxu0 0.0
    %305 = vmatpush1.msra.mxu0 %v275
    %306 = vmatprep.subr.mxu0 0.0
    %307 = vmatpush1.msra.mxu0 %v274
    %308 = vmatprep.subr.mxu0 0.0
    %309 = vmatpush1.msra.mxu0 %v273
    %310 = vmatprep.subr.mxu0 0.0
    %311 = vmatpush1.msra.mxu0 %v272
    %312 = vmatprep.subr.mxu0 0.0
    %313 = vmatpush1.msra.mxu0 %v271
    %314 = vmatprep.subr.mxu0 0.0
    %315 = vmatpush1.msra.mxu0 %v270
    %316 = vmatprep.subr.mxu0 0.0
    %317 = vmatpush1.msra.mxu0 %v269
    %318 = vmatprep.subr.mxu0 0.0
    %319 = vmatpush1.msra.mxu0 %v268
    %320 = vmatprep.subr.mxu0 0.0
    %321 = vmatpush1.msra.mxu0 %v267
    %322 = vmatprep.subr.mxu0 0.0
    %323 = vmatpush2.msra.mxu0 0.0
    %324 = vmatprep.subr.mxu0 0.0
    %325 = vmatpush2.msra.mxu0 0.0
    %326 = vmatprep.subr.mxu0 0.0
    %327 = vmatpush2.msra.mxu0 0.0
    %328 = vmatprep.subr.mxu0 0.0
    %329 = vmatpush2.msra.mxu0 0.0
    %330 = vmatprep.subr.mxu0 0.0
    %331 = vmatpush2.msra.mxu0 0.0
    %332 = vmatprep.subr.mxu0 0.0
    %333 = vmatpush2.msra.mxu0 0.0
    %334 = vmatprep.subr.mxu0 0.0
    %335 = vmatpush2.msra.mxu0 0.0
    %336 = vmatprep.subr.mxu0 0.0
    %337 = vmatpush2.msra.mxu0 0.0
    %338 = vmatprep.subr.mxu0 0.0
    %339 = vmatpush2.msra.mxu0 0.0
    %340 = vmatprep.subr.mxu0 0.0
    %341 = vmatpush2.msra.mxu0 0.0
    %342 = vmatprep.subr.mxu0 0.0
    %343 = vmatpush2.msra.mxu0 0.0
    %344 = vmatprep.subr.mxu0 0.0
    %345 = vmatpush2.msra.mxu0 0.0
    %346 = vmatprep.subr.mxu0 0.0
    %347 = vmatpush2.msra.mxu0 0.0
    %348 = vmatprep.subr.mxu0 0.0
    %349 = vmatpush2.msra.mxu0 0.0
    %350 = vmatprep.subr.mxu0 0.0
    %351 = vmatpush2.msra.mxu0 0.0
    %352 = vmatprep.subr.mxu0 0.0
    %353 = vmatpush2.msra.mxu0 0.0
    %354 = vmatprep.mubr.f32.mxu0 0.0
    %355 = vmatmul.mubr.f32.gmra.mxu0 %v264
    %v356 = vpop.f32.mrf.mxu0
    %v357 = vadd.f32 %v288, %v356
    %v358 = vpop.f32.mrf.mxu0
    %359 = vdwg.mxu0
    %v360 = vmax.f32 %v357, 0.0
    %v361 = vld [vmem:[#allocation4] sm:$0xff]
    %v362 = vld [vmem:[#allocation4 + $0x8] sm:$0xff]
    %v363 = vld [vmem:[#allocation4 + $0x10] sm:$0xff]
    %v364 = vld [vmem:[#allocation4 + $0x18] sm:$0xff]
    %v365 = vld [vmem:[#allocation4 + $0x20] sm:$0xff]
    %v366 = vld [vmem:[#allocation4 + $0x28] sm:$0xff]
    %v367 = vld [vmem:[#allocation4 + $0x30] sm:$0xff]
    %v368 = vld [vmem:[#allocation4 + $0x38] sm:$0xff]
    %v369 = vld [vmem:[#allocation4 + $0x40] sm:$0xff]
    %v370 = vld [vmem:[#allocation4 + $0x48] sm:$0xff]
    %v371 = vld [vmem:[#allocation4 + $0x50] sm:$0xff]
    %v372 = vld [vmem:[#allocation4 + $0x58] sm:$0xff]
    %v373 = vld [vmem:[#allocation4 + $0x60] sm:$0xff]
    %v374 = vld [vmem:[#allocation4 + $0x68] sm:$0xff]
    %v375 = vld [vmem:[#allocation4 + $0x70] sm:$0xff]
    %v376 = vld [vmem:[#allocation4 + $0x78] sm:$0xff]
    %v377 = vld [vmem:[%s6] sm:$0x1]
    %v379 = vlaneseq
    %v380 = vshrl.u32 %v379, 7
    %v381 = vsub.s32 0, %v380
    %v382 = vrot.slane %v377, %v381
    %384 = vmatprep.subr.mxu0 0.0
    %385 = vmatpush1.msra.mxu0 %v376
    %386 = vmatprep.subr.mxu0 0.0
    %387 = vmatpush1.msra.mxu0 %v375
    %388 = vmatprep.subr.mxu0 0.0
    %389 = vmatpush1.msra.mxu0 %v374
    %390 = vmatprep.subr.mxu0 0.0
    %391 = vmatpush1.msra.mxu0 %v373
    %392 = vmatprep.subr.mxu0 0.0
    %393 = vmatpush1.msra.mxu0 %v372
    %394 = vmatprep.subr.mxu0 0.0
    %395 = vmatpush1.msra.mxu0 %v371
    %396 = vmatprep.subr.mxu0 0.0
    %397 = vmatpush1.msra.mxu0 %v370
    %398 = vmatprep.subr.mxu0 0.0
    %399 = vmatpush1.msra.mxu0 %v369
    %400 = vmatprep.subr.mxu0 0.0
    %401 = vmatpush1.msra.mxu0 %v368
    %402 = vmatprep.subr.mxu0 0.0
    %403 = vmatpush1.msra.mxu0 %v367
    %404 = vmatprep.subr.mxu0 0.0
    %405 = vmatpush1.msra.mxu0 %v366
    %406 = vmatprep.subr.mxu0 0.0
    %407 = vmatpush1.msra.mxu0 %v365
    %408 = vmatprep.subr.mxu0 0.0
    %409 = vmatpush1.msra.mxu0 %v364
    %410 = vmatprep.subr.mxu0 0.0
    %411 = vmatpush1.msra.mxu0 %v363
    %412 = vmatprep.subr.mxu0 0.0
    %413 = vmatpush1.msra.mxu0 %v362
    %414 = vmatprep.subr.mxu0 0.0
    %415 = vmatpush1.msra.mxu0 %v361
    %416 = vmatprep.subr.mxu0 0.0
    %417 = vmatpush2.msra.mxu0 0.0
    %418 = vmatprep.subr.mxu0 0.0
    %419 = vmatpush2.msra.mxu0 0.0
    %420 = vmatprep.subr.mxu0 0.0
    %421 = vmatpush2.msra.mxu0 0.0
    %422 = vmatprep.subr.mxu0 0.0
    %423 = vmatpush2.msra.mxu0 0.0
    %424 = vmatprep.subr.mxu0 0.0
    %425 = vmatpush2.msra.mxu0 0.0
    %426 = vmatprep.subr.mxu0 0.0
    %427 = vmatpush2.msra.mxu0 0.0
    %428 = vmatprep.subr.mxu0 0.0
    %429 = vmatpush2.msra.mxu0 0.0
    %430 = vmatprep.subr.mxu0 0.0
    %431 = vmatpush2.msra.mxu0 0.0
    %432 = vmatprep.subr.mxu0 0.0
    %433 = vmatpush2.msra.mxu0 0.0
    %434 = vmatprep.subr.mxu0 0.0
    %435 = vmatpush2.msra.mxu0 0.0
    %436 = vmatprep.subr.mxu0 0.0
    %437 = vmatpush2.msra.mxu0 0.0
    %438 = vmatprep.subr.mxu0 0.0
    %439 = vmatpush2.msra.mxu0 0.0
    %440 = vmatprep.subr.mxu0 0.0
    %441 = vmatpush2.msra.mxu0 0.0
    %442 = vmatprep.subr.mxu0 0.0
    %443 = vmatpush2.msra.mxu0 0.0
    %444 = vmatprep.subr.mxu0 0.0
    %445 = vmatpush2.msra.mxu0 0.0
    %446 = vmatprep.subr.mxu0 0.0
    %447 = vmatpush2.msra.mxu0 0.0
    %448 = vmatprep.mubr.f32.mxu0 0.0
    %449 = vmatmul.mubr.f32.gmra.mxu0 %v360
    %v450 = vpop.f32.mrf.mxu0
    %v451 = vadd.f32 %v382, %v450
    %v452 = vpop.f32.mrf.mxu0
    %453 = vdwg.mxu0
    %v454 = vmax.f32 %v451, 0.0
    %v455 = vld [vmem:[%s7] sm:$0xff]
    %v456 = vld [vmem:[%s7 + $0x8] sm:$0xff]
    %v457 = vld [vmem:[%s7 + $0x10] sm:$0xff]
    %v458 = vld [vmem:[%s7 + $0x18] sm:$0xff]
    %v459 = vld [vmem:[%s7 + $0x20] sm:$0xff]
    %v460 = vld [vmem:[%s7 + $0x28] sm:$0xff]
    %v461 = vld [vmem:[%s7 + $0x30] sm:$0xff]
    %v462 = vld [vmem:[%s7 + $0x38] sm:$0xff]
    %v463 = vld [vmem:[%s7 + $0x40] sm:$0xff]
    %v464 = vld [vmem:[%s7 + $0x48] sm:$0xff]
    %v465 = vld [vmem:[%s7 + $0x50] sm:$0xff]
    %v466 = vld [vmem:[%s7 + $0x58] sm:$0xff]
    %v467 = vld [vmem:[%s7 + $0x60] sm:$0xff]
    %v468 = vld [vmem:[%s7 + $0x68] sm:$0xff]
    %v469 = vld [vmem:[%s7 + $0x70] sm:$0xff]
    %v470 = vld [vmem:[%s7 + $0x78] sm:$0xff]
    %v471 = vld [vmem:[%s8] sm:$0x1]
    %v473 = vlaneseq
    %v474 = vshrl.u32 %v473, 7
    %v475 = vsub.s32 0, %v474
    %v476 = vrot.slane %v471, %v475
    %478 = vmatprep.subr.mxu0 0.0
    %479 = vmatpush1.msra.mxu0 %v470
    %480 = vmatprep.subr.mxu0 0.0
    %481 = vmatpush1.msra.mxu0 %v469
    %482 = vmatprep.subr.mxu0 0.0
    %483 = vmatpush1.msra.mxu0 %v468
    %484 = vmatprep.subr.mxu0 0.0
    %485 = vmatpush1.msra.mxu0 %v467
    %486 = vmatprep.subr.mxu0 0.0
    %487 = vmatpush1.msra.mxu0 %v466
    %488 = vmatprep.subr.mxu0 0.0
    %489 = vmatpush1.msra.mxu0 %v465
    %490 = vmatprep.subr.mxu0 0.0
    %491 = vmatpush1.msra.mxu0 %v464
    %492 = vmatprep.subr.mxu0 0.0
    %493 = vmatpush1.msra.mxu0 %v463
    %494 = vmatprep.subr.mxu0 0.0
    %495 = vmatpush1.msra.mxu0 %v462
    %496 = vmatprep.subr.mxu0 0.0
    %497 = vmatpush1.msra.mxu0 %v461
    %498 = vmatprep.subr.mxu0 0.0
    %499 = vmatpush1.msra.mxu0 %v460
    %500 = vmatprep.subr.mxu0 0.0
    %501 = vmatpush1.msra.mxu0 %v459
    %502 = vmatprep.subr.mxu0 0.0
    %503 = vmatpush1.msra.mxu0 %v458
    %504 = vmatprep.subr.mxu0 0.0
    %505 = vmatpush1.msra.mxu0 %v457
    %506 = vmatprep.subr.mxu0 0.0
    %507 = vmatpush1.msra.mxu0 %v456
    %508 = vmatprep.subr.mxu0 0.0
    %509 = vmatpush1.msra.mxu0 %v455
    %510 = vmatprep.subr.mxu0 0.0
    %511 = vmatpush2.msra.mxu0 0.0
    %512 = vmatprep.subr.mxu0 0.0
    %513 = vmatpush2.msra.mxu0 0.0
    %514 = vmatprep.subr.mxu0 0.0
    %515 = vmatpush2.msra.mxu0 0.0
    %516 = vmatprep.subr.mxu0 0.0
    %517 = vmatpush2.msra.mxu0 0.0
    %518 = vmatprep.subr.mxu0 0.0
    %519 = vmatpush2.msra.mxu0 0.0
    %520 = vmatprep.subr.mxu0 0.0
    %521 = vmatpush2.msra.mxu0 0.0
    %522 = vmatprep.subr.mxu0 0.0
    %523 = vmatpush2.msra.mxu0 0.0
    %524 = vmatprep.subr.mxu0 0.0
    %525 = vmatpush2.msra.mxu0 0.0
    %526 = vmatprep.subr.mxu0 0.0
    %527 = vmatpush2.msra.mxu0 0.0
    %528 = vmatprep.subr.mxu0 0.0
    %529 = vmatpush2.msra.mxu0 0.0
    %530 = vmatprep.subr.mxu0 0.0
    %531 = vmatpush2.msra.mxu0 0.0
    %532 = vmatprep.subr.mxu0 0.0
    %533 = vmatpush2.msra.mxu0 0.0
    %534 = vmatprep.subr.mxu0 0.0
    %535 = vmatpush2.msra.mxu0 0.0
    %536 = vmatprep.subr.mxu0 0.0
    %537 = vmatpush2.msra.mxu0 0.0
    %538 = vmatprep.subr.mxu0 0.0
    %539 = vmatpush2.msra.mxu0 0.0
    %540 = vmatprep.subr.mxu0 0.0
    %541 = vmatpush2.msra.mxu0 0.0
    %542 = vmatprep.mubr.f32.mxu0 0.0
    %543 = vmatmul.mubr.f32.gmra.mxu0 %v454
    %v544 = vpop.f32.mrf.mxu0
    %v545 = vadd.f32 %v476, %v544
    %v546 = vpop.f32.mrf.mxu0
    %547 = vdwg.mxu0
    %v548 = vmax.f32 %v545, 0.0
    %vm549 = vcmp.ge.f32.partialorder %v548, 0.0
    %v550 = vmul.f32 %v548, 0.01
    %v551 = vsel %vm549, %v548, %v550
    %v552 = vld [vmem:[%s9] sm:$0xff]
    %v553 = vld [vmem:[%s9 + $0x8] sm:$0xff]
    %v554 = vld [vmem:[%s9 + $0x10] sm:$0xff]
    %v555 = vld [vmem:[%s9 + $0x18] sm:$0xff]
    %v556 = vld [vmem:[%s9 + $0x20] sm:$0xff]
    %v557 = vld [vmem:[%s9 + $0x28] sm:$0xff]
    %v558 = vld [vmem:[%s9 + $0x30] sm:$0xff]
    %v559 = vld [vmem:[%s9 + $0x38] sm:$0xff]
    %v560 = vld [vmem:[%s10] sm:$0x1]
    %v562 = vlaneseq
    %v563 = vshrl.u32 %v562, 7
    %v564 = vsub.s32 0, %v563
    %v565 = vrot.slane %v560, %v564
    %vm567 = vcmask 523264
    %v569 = vsel %vm567, %v551, 0
    %571 = vmatprep.subr.mxu0 0.0
    %572 = vmatpush1.msra.mxu0 0.0
    %573 = vmatprep.subr.mxu0 0.0
    %574 = vmatpush1.msra.mxu0 0.0
    %575 = vmatprep.subr.mxu0 0.0
    %576 = vmatpush1.msra.mxu0 0.0
    %577 = vmatprep.subr.mxu0 0.0
    %578 = vmatpush1.msra.mxu0 0.0
    %579 = vmatprep.subr.mxu0 0.0
    %580 = vmatpush1.msra.mxu0 0.0
    %581 = vmatprep.subr.mxu0 0.0
    %582 = vmatpush1.msra.mxu0 0.0
    %583 = vmatprep.subr.mxu0 0.0
    %584 = vmatpush1.msra.mxu0 0.0
    %585 = vmatprep.subr.mxu0 0.0
    %586 = vmatpush1.msra.mxu0 0.0
    %587 = vmatprep.subr.mxu0 0.0
    %588 = vmatpush1.msra.mxu0 %v559
    %589 = vmatprep.subr.mxu0 0.0
    %590 = vmatpush1.msra.mxu0 %v558
    %591 = vmatprep.subr.mxu0 0.0
    %592 = vmatpush1.msra.mxu0 %v557
    %593 = vmatprep.subr.mxu0 0.0
    %594 = vmatpush1.msra.mxu0 %v556
    %595 = vmatprep.subr.mxu0 0.0
    %596 = vmatpush1.msra.mxu0 %v555
    %597 = vmatprep.subr.mxu0 0.0
    %598 = vmatpush1.msra.mxu0 %v554
    %599 = vmatprep.subr.mxu0 0.0
    %600 = vmatpush1.msra.mxu0 %v553
    %601 = vmatprep.subr.mxu0 0.0
    %602 = vmatpush1.msra.mxu0 %v552
    %603 = vmatprep.subr.mxu0 0.0
    %604 = vmatpush2.msra.mxu0 0.0
    %605 = vmatprep.subr.mxu0 0.0
    %606 = vmatpush2.msra.mxu0 0.0
    %607 = vmatprep.subr.mxu0 0.0
    %608 = vmatpush2.msra.mxu0 0.0
    %609 = vmatprep.subr.mxu0 0.0
    %610 = vmatpush2.msra.mxu0 0.0
    %611 = vmatprep.subr.mxu0 0.0
    %612 = vmatpush2.msra.mxu0 0.0
    %613 = vmatprep.subr.mxu0 0.0
    %614 = vmatpush2.msra.mxu0 0.0
    %615 = vmatprep.subr.mxu0 0.0
    %616 = vmatpush2.msra.mxu0 0.0
    %617 = vmatprep.subr.mxu0 0.0
    %618 = vmatpush2.msra.mxu0 0.0
    %619 = vmatprep.subr.mxu0 0.0
    %620 = vmatpush2.msra.mxu0 0.0
    %621 = vmatprep.subr.mxu0 0.0
    %622 = vmatpush2.msra.mxu0 0.0
    %623 = vmatprep.subr.mxu0 0.0
    %624 = vmatpush2.msra.mxu0 0.0
    %625 = vmatprep.subr.mxu0 0.0
    %626 = vmatpush2.msra.mxu0 0.0
    %627 = vmatprep.subr.mxu0 0.0
    %628 = vmatpush2.msra.mxu0 0.0
    %629 = vmatprep.subr.mxu0 0.0
    %630 = vmatpush2.msra.mxu0 0.0
    %631 = vmatprep.subr.mxu0 0.0
    %632 = vmatpush2.msra.mxu0 0.0
    %633 = vmatprep.subr.mxu0 0.0
    %634 = vmatpush2.msra.mxu0 0.0
    %635 = vmatprep.mubr.f32.mxu0 0.0
    %636 = vmatmul.mubr.f32.gmra.mxu0 %v569
    %v637 = vpop.f32.mrf.mxu0
    %v638 = vadd.f32 %v565, %v637
    %v639 = vpop.f32.mrf.mxu0
    %640 = vdwg.mxu0
    %vm641 = vcmp.ge.f32.partialorder %v638, 0.0
    %v642 = vmul.f32 %v638, 0.01
    %v643 = vsel %vm641, %v638, %v642
    %v644 = vld [vmem:[#allocation6] sm:$0xff]
    %v645 = vld [vmem:[#allocation6 + $0x8] sm:$0xff]
    %v646 = vld [vmem:[#allocation6 + $0x10] sm:$0xff]
    %v647 = vld [vmem:[#allocation6 + $0x18] sm:$0xff]
    %v648 = vld [vmem:[#allocation6 + $0x20] sm:$0xff]
    %v649 = vld [vmem:[#allocation6 + $0x28] sm:$0xff]
    %v650 = vld [vmem:[#allocation6 + $0x30] sm:$0xff]
    %v651 = vld [vmem:[#allocation6 + $0x38] sm:$0xff]
    %v652 = vld [vmem:[%s12] sm:$0x1]
    %v654 = vlaneseq
    %v655 = vshrl.u32 %v654, 7
    %v656 = vsub.s32 0, %v655
    %v657 = vrot.slane %v652, %v656
    %v660 = vsel %vm567, %v643, 0
    %662 = vmatprep.subr.mxu0 0.0
    %663 = vmatpush1.msra.mxu0 0.0
    %664 = vmatprep.subr.mxu0 0.0
    %665 = vmatpush1.msra.mxu0 0.0
    %666 = vmatprep.subr.mxu0 0.0
    %667 = vmatpush1.msra.mxu0 0.0
    %668 = vmatprep.subr.mxu0 0.0
    %669 = vmatpush1.msra.mxu0 0.0
    %670 = vmatprep.subr.mxu0 0.0
    %671 = vmatpush1.msra.mxu0 0.0
    %672 = vmatprep.subr.mxu0 0.0
    %673 = vmatpush1.msra.mxu0 0.0
    %674 = vmatprep.subr.mxu0 0.0
    %675 = vmatpush1.msra.mxu0 0.0
    %676 = vmatprep.subr.mxu0 0.0
    %677 = vmatpush1.msra.mxu0 0.0
    %678 = vmatprep.subr.mxu0 0.0
    %679 = vmatpush1.msra.mxu0 %v651
    %680 = vmatprep.subr.mxu0 0.0
    %681 = vmatpush1.msra.mxu0 %v650
    %682 = vmatprep.subr.mxu0 0.0
    %683 = vmatpush1.msra.mxu0 %v649
    %684 = vmatprep.subr.mxu0 0.0
    %685 = vmatpush1.msra.mxu0 %v648
    %686 = vmatprep.subr.mxu0 0.0
    %687 = vmatpush1.msra.mxu0 %v647
    %688 = vmatprep.subr.mxu0 0.0
    %689 = vmatpush1.msra.mxu0 %v646
    %690 = vmatprep.subr.mxu0 0.0
    %691 = vmatpush1.msra.mxu0 %v645
    %692 = vmatprep.subr.mxu0 0.0
    %693 = vmatpush1.msra.mxu0 %v644
    %694 = vmatprep.subr.mxu0 0.0
    %695 = vmatpush2.msra.mxu0 0.0
    %696 = vmatprep.subr.mxu0 0.0
    %697 = vmatpush2.msra.mxu0 0.0
    %698 = vmatprep.subr.mxu0 0.0
    %699 = vmatpush2.msra.mxu0 0.0
    %700 = vmatprep.subr.mxu0 0.0
    %701 = vmatpush2.msra.mxu0 0.0
    %702 = vmatprep.subr.mxu0 0.0
    %703 = vmatpush2.msra.mxu0 0.0
    %704 = vmatprep.subr.mxu0 0.0
    %705 = vmatpush2.msra.mxu0 0.0
    %706 = vmatprep.subr.mxu0 0.0
    %707 = vmatpush2.msra.mxu0 0.0
    %708 = vmatprep.subr.mxu0 0.0
    %709 = vmatpush2.msra.mxu0 0.0
    %710 = vmatprep.subr.mxu0 0.0
    %711 = vmatpush2.msra.mxu0 0.0
    %712 = vmatprep.subr.mxu0 0.0
    %713 = vmatpush2.msra.mxu0 0.0
    %714 = vmatprep.subr.mxu0 0.0
    %715 = vmatpush2.msra.mxu0 0.0
    %716 = vmatprep.subr.mxu0 0.0
    %717 = vmatpush2.msra.mxu0 0.0
    %718 = vmatprep.subr.mxu0 0.0
    %719 = vmatpush2.msra.mxu0 0.0
    %720 = vmatprep.subr.mxu0 0.0
    %721 = vmatpush2.msra.mxu0 0.0
    %722 = vmatprep.subr.mxu0 0.0
    %723 = vmatpush2.msra.mxu0 0.0
    %724 = vmatprep.subr.mxu0 0.0
    %725 = vmatpush2.msra.mxu0 0.0
    %726 = vmatprep.mubr.f32.mxu0 0.0
    %727 = vmatmul.mubr.f32.gmra.mxu0 %v660
    %v728 = vpop.f32.mrf.mxu0
    %v729 = vadd.f32 %v657, %v728
    %v730 = vpop.f32.mrf.mxu0
    %731 = vdwg.mxu0
    %v732 = vadd.f32 %v548, %v729
    %vm733 = vcmp.ge.f32.partialorder %v732, 0.0
    %v734 = vmul.f32 %v732, 0.01
    %v735 = vsel %vm733, %v732, %v734
    %v736 = vld [vmem:[#allocation7] sm:$0xff]
    %v737 = vld [vmem:[#allocation7 + $0x8] sm:$0xff]
    %v738 = vld [vmem:[#allocation7 + $0x10] sm:$0xff]
    %v739 = vld [vmem:[#allocation7 + $0x18] sm:$0xff]
    %v740 = vld [vmem:[#allocation7 + $0x20] sm:$0xff]
    %v741 = vld [vmem:[#allocation7 + $0x28] sm:$0xff]
    %v742 = vld [vmem:[#allocation7 + $0x30] sm:$0xff]
    %v743 = vld [vmem:[#allocation7 + $0x38] sm:$0xff]
    %v744 = vld [vmem:[%s14] sm:$0x1]
    %v746 = vlaneseq
    %v747 = vshrl.u32 %v746, 7
    %v748 = vsub.s32 0, %v747
    %v749 = vrot.slane %v744, %v748
    %v752 = vsel %vm567, %v735, 0
    %754 = vmatprep.subr.mxu0 0.0
    %755 = vmatpush1.msra.mxu0 0.0
    %756 = vmatprep.subr.mxu0 0.0
    %757 = vmatpush1.msra.mxu0 0.0
    %758 = vmatprep.subr.mxu0 0.0
    %759 = vmatpush1.msra.mxu0 0.0
    %760 = vmatprep.subr.mxu0 0.0
    %761 = vmatpush1.msra.mxu0 0.0
    %762 = vmatprep.subr.mxu0 0.0
    %763 = vmatpush1.msra.mxu0 0.0
    %764 = vmatprep.subr.mxu0 0.0
    %765 = vmatpush1.msra.mxu0 0.0
    %766 = vmatprep.subr.mxu0 0.0
    %767 = vmatpush1.msra.mxu0 0.0
    %768 = vmatprep.subr.mxu0 0.0
    %769 = vmatpush1.msra.mxu0 0.0
    %770 = vmatprep.subr.mxu0 0.0
    %771 = vmatpush1.msra.mxu0 %v743
    %772 = vmatprep.subr.mxu0 0.0
    %773 = vmatpush1.msra.mxu0 %v742
    %774 = vmatprep.subr.mxu0 0.0
    %775 = vmatpush1.msra.mxu0 %v741
    %776 = vmatprep.subr.mxu0 0.0
    %777 = vmatpush1.msra.mxu0 %v740
    %778 = vmatprep.subr.mxu0 0.0
    %779 = vmatpush1.msra.mxu0 %v739
    %780 = vmatprep.subr.mxu0 0.0
    %781 = vmatpush1.msra.mxu0 %v738
    %782 = vmatprep.subr.mxu0 0.0
    %783 = vmatpush1.msra.mxu0 %v737
    %784 = vmatprep.subr.mxu0 0.0
    %785 = vmatpush1.msra.mxu0 %v736
    %786 = vmatprep.subr.mxu0 0.0
    %787 = vmatpush2.msra.mxu0 0.0
    %788 = vmatprep.subr.mxu0 0.0
    %789 = vmatpush2.msra.mxu0 0.0
    %790 = vmatprep.subr.mxu0 0.0
    %791 = vmatpush2.msra.mxu0 0.0
    %792 = vmatprep.subr.mxu0 0.0
    %793 = vmatpush2.msra.mxu0 0.0
    %794 = vmatprep.subr.mxu0 0.0
    %795 = vmatpush2.msra.mxu0 0.0
    %796 = vmatprep.subr.mxu0 0.0
    %797 = vmatpush2.msra.mxu0 0.0
    %798 = vmatprep.subr.mxu0 0.0
    %799 = vmatpush2.msra.mxu0 0.0
    %800 = vmatprep.subr.mxu0 0.0
    %801 = vmatpush2.msra.mxu0 0.0
    %802 = vmatprep.subr.mxu0 0.0
    %803 = vmatpush2.msra.mxu0 0.0
    %804 = vmatprep.subr.mxu0 0.0
    %805 = vmatpush2.msra.mxu0 0.0
    %806 = vmatprep.subr.mxu0 0.0
    %807 = vmatpush2.msra.mxu0 0.0
    %808 = vmatprep.subr.mxu0 0.0
    %809 = vmatpush2.msra.mxu0 0.0
    %810 = vmatprep.subr.mxu0 0.0
    %811 = vmatpush2.msra.mxu0 0.0
    %812 = vmatprep.subr.mxu0 0.0
    %813 = vmatpush2.msra.mxu0 0.0
    %814 = vmatprep.subr.mxu0 0.0
    %815 = vmatpush2.msra.mxu0 0.0
    %816 = vmatprep.subr.mxu0 0.0
    %817 = vmatpush2.msra.mxu0 0.0
    %818 = vmatprep.mubr.f32.mxu0 0.0
    %819 = vmatmul.mubr.f32.gmra.mxu0 %v752
    %v820 = vpop.f32.mrf.mxu0
    %v821 = vadd.f32 %v749, %v820
    %v822 = vpop.f32.mrf.mxu0
    %823 = vdwg.mxu0
    %vm824 = vcmp.ge.f32.partialorder %v821, 0.0
    %v825 = vmul.f32 %v821, 0.01
    %v826 = vsel %vm824, %v821, %v825
    %v827 = vld [vmem:[#allocation9] sm:$0xff]
    %v828 = vld [vmem:[#allocation9 + $0x8] sm:$0xff]
    %v829 = vld [vmem:[#allocation9 + $0x10] sm:$0xff]
    %v830 = vld [vmem:[#allocation9 + $0x18] sm:$0xff]
    %v831 = vld [vmem:[#allocation9 + $0x20] sm:$0xff]
    %v832 = vld [vmem:[#allocation9 + $0x28] sm:$0xff]
    %v833 = vld [vmem:[#allocation9 + $0x30] sm:$0xff]
    %v834 = vld [vmem:[#allocation9 + $0x38] sm:$0xff]
    %v835 = vld [vmem:[%s16] sm:$0x1]
    %v837 = vlaneseq
    %v838 = vshrl.u32 %v837, 7
    %v839 = vsub.s32 0, %v838
    %v840 = vrot.slane %v835, %v839
    %v843 = vsel %vm567, %v826, 0
    %845 = vmatprep.subr.mxu0 0.0
    %846 = vmatpush1.msra.mxu0 0.0
    %847 = vmatprep.subr.mxu0 0.0
    %848 = vmatpush1.msra.mxu0 0.0
    %849 = vmatprep.subr.mxu0 0.0
    %850 = vmatpush1.msra.mxu0 0.0
    %851 = vmatprep.subr.mxu0 0.0
    %852 = vmatpush1.msra.mxu0 0.0
    %853 = vmatprep.subr.mxu0 0.0
    %854 = vmatpush1.msra.mxu0 0.0
    %855 = vmatprep.subr.mxu0 0.0
    %856 = vmatpush1.msra.mxu0 0.0
    %857 = vmatprep.subr.mxu0 0.0
    %858 = vmatpush1.msra.mxu0 0.0
    %859 = vmatprep.subr.mxu0 0.0
    %860 = vmatpush1.msra.mxu0 0.0
    %861 = vmatprep.subr.mxu0 0.0
    %862 = vmatpush1.msra.mxu0 %v834
    %863 = vmatprep.subr.mxu0 0.0
    %864 = vmatpush1.msra.mxu0 %v833
    %865 = vmatprep.subr.mxu0 0.0
    %866 = vmatpush1.msra.mxu0 %v832
    %867 = vmatprep.subr.mxu0 0.0
    %868 = vmatpush1.msra.mxu0 %v831
    %869 = vmatprep.subr.mxu0 0.0
    %870 = vmatpush1.msra.mxu0 %v830
    %871 = vmatprep.subr.mxu0 0.0
    %872 = vmatpush1.msra.mxu0 %v829
    %873 = vmatprep.subr.mxu0 0.0
    %874 = vmatpush1.msra.mxu0 %v828
    %875 = vmatprep.subr.mxu0 0.0
    %876 = vmatpush1.msra.mxu0 %v827
    %877 = vmatprep.subr.mxu0 0.0
    %878 = vmatpush2.msra.mxu0 0.0
    %879 = vmatprep.subr.mxu0 0.0
    %880 = vmatpush2.msra.mxu0 0.0
    %881 = vmatprep.subr.mxu0 0.0
    %882 = vmatpush2.msra.mxu0 0.0
    %883 = vmatprep.subr.mxu0 0.0
    %884 = vmatpush2.msra.mxu0 0.0
    %885 = vmatprep.subr.mxu0 0.0
    %886 = vmatpush2.msra.mxu0 0.0
    %887 = vmatprep.subr.mxu0 0.0
    %888 = vmatpush2.msra.mxu0 0.0
    %889 = vmatprep.subr.mxu0 0.0
    %890 = vmatpush2.msra.mxu0 0.0
    %891 = vmatprep.subr.mxu0 0.0
    %892 = vmatpush2.msra.mxu0 0.0
    %893 = vmatprep.subr.mxu0 0.0
    %894 = vmatpush2.msra.mxu0 0.0
    %895 = vmatprep.subr.mxu0 0.0
    %896 = vmatpush2.msra.mxu0 0.0
    %897 = vmatprep.subr.mxu0 0.0
    %898 = vmatpush2.msra.mxu0 0.0
    %899 = vmatprep.subr.mxu0 0.0
    %900 = vmatpush2.msra.mxu0 0.0
    %901 = vmatprep.subr.mxu0 0.0
    %902 = vmatpush2.msra.mxu0 0.0
    %903 = vmatprep.subr.mxu0 0.0
    %904 = vmatpush2.msra.mxu0 0.0
    %905 = vmatprep.subr.mxu0 0.0
    %906 = vmatpush2.msra.mxu0 0.0
    %907 = vmatprep.subr.mxu0 0.0
    %908 = vmatpush2.msra.mxu0 0.0
    %909 = vmatprep.mubr.f32.mxu0 0.0
    %910 = vmatmul.mubr.f32.gmra.mxu0 %v843
    %v911 = vpop.f32.mrf.mxu0
    %v912 = vadd.f32 %v840, %v911
    %v913 = vpop.f32.mrf.mxu0
    %914 = vdwg.mxu0
    %v915 = vadd.f32 %v732, %v912
    %v916 = vld [vmem:[#allocation10] sm:$0xff]
    %v917 = vld [vmem:[#allocation10 + $0x8] sm:$0xff]
    %v918 = vld [vmem:[#allocation10 + $0x10] sm:$0xff]
    %v919 = vld [vmem:[#allocation10 + $0x18] sm:$0xff]
    %v920 = vld [vmem:[#allocation10 + $0x20] sm:$0xff]
    %v921 = vld [vmem:[#allocation10 + $0x28] sm:$0xff]
    %v922 = vld [vmem:[#allocation10 + $0x30] sm:$0xff]
    %v923 = vld [vmem:[#allocation10 + $0x38] sm:$0xff]
    %v924 = vld [vmem:[%s18] sm:$0x1]
    %v926 = vlaneseq
    %v927 = vshrl.u32 %v926, 7
    %v928 = vsub.s32 0, %v927
    %v929 = vrot.slane %v924, %v928
    %v932 = vsel %vm567, %v915, 0
    %934 = vmatprep.subr.mxu0 0.0
    %935 = vmatpush1.msra.mxu0 0.0
    %936 = vmatprep.subr.mxu0 0.0
    %937 = vmatpush1.msra.mxu0 0.0
    %938 = vmatprep.subr.mxu0 0.0
    %939 = vmatpush1.msra.mxu0 0.0
    %940 = vmatprep.subr.mxu0 0.0
    %941 = vmatpush1.msra.mxu0 0.0
    %942 = vmatprep.subr.mxu0 0.0
    %943 = vmatpush1.msra.mxu0 0.0
    %944 = vmatprep.subr.mxu0 0.0
    %945 = vmatpush1.msra.mxu0 0.0
    %946 = vmatprep.subr.mxu0 0.0
    %947 = vmatpush1.msra.mxu0 0.0
    %948 = vmatprep.subr.mxu0 0.0
    %949 = vmatpush1.msra.mxu0 0.0
    %950 = vmatprep.subr.mxu0 0.0
    %951 = vmatpush1.msra.mxu0 %v923
    %952 = vmatprep.subr.mxu0 0.0
    %953 = vmatpush1.msra.mxu0 %v922
    %954 = vmatprep.subr.mxu0 0.0
    %955 = vmatpush1.msra.mxu0 %v921
    %956 = vmatprep.subr.mxu0 0.0
    %957 = vmatpush1.msra.mxu0 %v920
    %958 = vmatprep.subr.mxu0 0.0
    %959 = vmatpush1.msra.mxu0 %v919
    %960 = vmatprep.subr.mxu0 0.0
    %961 = vmatpush1.msra.mxu0 %v918
    %962 = vmatprep.subr.mxu0 0.0
    %963 = vmatpush1.msra.mxu0 %v917
    %964 = vmatprep.subr.mxu0 0.0
    %965 = vmatpush1.msra.mxu0 %v916
    %966 = vmatprep.subr.mxu0 0.0
    %967 = vmatpush2.msra.mxu0 0.0
    %968 = vmatprep.subr.mxu0 0.0
    %969 = vmatpush2.msra.mxu0 0.0
    %970 = vmatprep.subr.mxu0 0.0
    %971 = vmatpush2.msra.mxu0 0.0
    %972 = vmatprep.subr.mxu0 0.0
    %973 = vmatpush2.msra.mxu0 0.0
    %974 = vmatprep.subr.mxu0 0.0
    %975 = vmatpush2.msra.mxu0 0.0
    %976 = vmatprep.subr.mxu0 0.0
    %977 = vmatpush2.msra.mxu0 0.0
    %978 = vmatprep.subr.mxu0 0.0
    %979 = vmatpush2.msra.mxu0 0.0
    %980 = vmatprep.subr.mxu0 0.0
    %981 = vmatpush2.msra.mxu0 0.0
    %982 = vmatprep.subr.mxu0 0.0
    %983 = vmatpush2.msra.mxu0 0.0
    %984 = vmatprep.subr.mxu0 0.0
    %985 = vmatpush2.msra.mxu0 0.0
    %986 = vmatprep.subr.mxu0 0.0
    %987 = vmatpush2.msra.mxu0 0.0
    %988 = vmatprep.subr.mxu0 0.0
    %989 = vmatpush2.msra.mxu0 0.0
    %990 = vmatprep.subr.mxu0 0.0
    %991 = vmatpush2.msra.mxu0 0.0
    %992 = vmatprep.subr.mxu0 0.0
    %993 = vmatpush2.msra.mxu0 0.0
    %994 = vmatprep.subr.mxu0 0.0
    %995 = vmatpush2.msra.mxu0 0.0
    %996 = vmatprep.subr.mxu0 0.0
    %997 = vmatpush2.msra.mxu0 0.0
    %998 = vmatprep.mubr.f32.mxu0 0.0
    %999 = vmatmul.mubr.f32.gmra.mxu0 %v932
    %v1000 = vpop.f32.mrf.mxu0
    %v1001 = vadd.f32 %v929, %v1000
    %v1002 = vpop.f32.mrf.mxu0
    %1003 = vdwg.mxu0
    %v1004 = vld [vmem:[#allocation12] sm:$0xff]
    %v1005 = vld [vmem:[#allocation12 + $0x8] sm:$0xff]
    %v1006 = vld [vmem:[#allocation12 + $0x10] sm:$0xff]
    %v1007 = vld [vmem:[#allocation12 + $0x18] sm:$0xff]
    %v1008 = vld [vmem:[#allocation12 + $0x20] sm:$0xff]
    %v1009 = vld [vmem:[#allocation12 + $0x28] sm:$0xff]
    %v1010 = vld [vmem:[#allocation12 + $0x30] sm:$0xff]
    %v1011 = vld [vmem:[#allocation12 + $0x38] sm:$0xff]
    %v1012 = vld [vmem:[%s20] sm:$0x1]
    %v1014 = vlaneseq
    %v1015 = vshrl.u32 %v1014, 7
    %v1016 = vsub.s32 0, %v1015
    %v1017 = vrot.slane %v1012, %v1016
    %v1020 = vsel %vm567, %v1001, 0
    %1022 = vmatprep.subr.mxu0 0.0
    %1023 = vmatpush1.msra.mxu0 0.0
    %1024 = vmatprep.subr.mxu0 0.0
    %1025 = vmatpush1.msra.mxu0 0.0
    %1026 = vmatprep.subr.mxu0 0.0
    %1027 = vmatpush1.msra.mxu0 0.0
    %1028 = vmatprep.subr.mxu0 0.0
    %1029 = vmatpush1.msra.mxu0 0.0
    %1030 = vmatprep.subr.mxu0 0.0
    %1031 = vmatpush1.msra.mxu0 0.0
    %1032 = vmatprep.subr.mxu0 0.0
    %1033 = vmatpush1.msra.mxu0 0.0
    %1034 = vmatprep.subr.mxu0 0.0
    %1035 = vmatpush1.msra.mxu0 0.0
    %1036 = vmatprep.subr.mxu0 0.0
    %1037 = vmatpush1.msra.mxu0 0.0
    %1038 = vmatprep.subr.mxu0 0.0
    %1039 = vmatpush1.msra.mxu0 %v1011
    %1040 = vmatprep.subr.mxu0 0.0
    %1041 = vmatpush1.msra.mxu0 %v1010
    %1042 = vmatprep.subr.mxu0 0.0
    %1043 = vmatpush1.msra.mxu0 %v1009
    %1044 = vmatprep.subr.mxu0 0.0
    %1045 = vmatpush1.msra.mxu0 %v1008
    %1046 = vmatprep.subr.mxu0 0.0
    %1047 = vmatpush1.msra.mxu0 %v1007
    %1048 = vmatprep.subr.mxu0 0.0
    %1049 = vmatpush1.msra.mxu0 %v1006
    %1050 = vmatprep.subr.mxu0 0.0
    %1051 = vmatpush1.msra.mxu0 %v1005
    %1052 = vmatprep.subr.mxu0 0.0
    %1053 = vmatpush1.msra.mxu0 %v1004
    %1054 = vmatprep.subr.mxu0 0.0
    %1055 = vmatpush2.msra.mxu0 0.0
    %1056 = vmatprep.subr.mxu0 0.0
    %1057 = vmatpush2.msra.mxu0 0.0
    %1058 = vmatprep.subr.mxu0 0.0
    %1059 = vmatpush2.msra.mxu0 0.0
    %1060 = vmatprep.subr.mxu0 0.0
    %1061 = vmatpush2.msra.mxu0 0.0
    %1062 = vmatprep.subr.mxu0 0.0
    %1063 = vmatpush2.msra.mxu0 0.0
    %1064 = vmatprep.subr.mxu0 0.0
    %1065 = vmatpush2.msra.mxu0 0.0
    %1066 = vmatprep.subr.mxu0 0.0
    %1067 = vmatpush2.msra.mxu0 0.0
    %1068 = vmatprep.subr.mxu0 0.0
    %1069 = vmatpush2.msra.mxu0 0.0
    %1070 = vmatprep.subr.mxu0 0.0
    %1071 = vmatpush2.msra.mxu0 0.0
    %1072 = vmatprep.subr.mxu0 0.0
    %1073 = vmatpush2.msra.mxu0 0.0
    %1074 = vmatprep.subr.mxu0 0.0
    %1075 = vmatpush2.msra.mxu0 0.0
    %1076 = vmatprep.subr.mxu0 0.0
    %1077 = vmatpush2.msra.mxu0 0.0
    %1078 = vmatprep.subr.mxu0 0.0
    %1079 = vmatpush2.msra.mxu0 0.0
    %1080 = vmatprep.subr.mxu0 0.0
    %1081 = vmatpush2.msra.mxu0 0.0
    %1082 = vmatprep.subr.mxu0 0.0
    %1083 = vmatpush2.msra.mxu0 0.0
    %1084 = vmatprep.subr.mxu0 0.0
    %1085 = vmatpush2.msra.mxu0 0.0
    %1086 = vmatprep.mubr.f32.mxu0 0.0
    %1087 = vmatmul.mubr.f32.gmra.mxu0 %v1020
    %v1088 = vpop.f32.mrf.mxu0
    %v1089 = vadd.f32 %v1017, %v1088
    %v1090 = vpop.f32.mrf.mxu0
    %1091 = vdwg.mxu0
    %v1092 = vld [vmem:[#allocation13] sm:$0xff]
    %v1093 = vld [vmem:[#allocation13 + $0x8] sm:$0xff]
    %v1094 = vld [vmem:[#allocation13 + $0x10] sm:$0xff]
    %v1095 = vld [vmem:[#allocation13 + $0x18] sm:$0xff]
    %v1096 = vld [vmem:[#allocation13 + $0x20] sm:$0xff]
    %v1097 = vld [vmem:[#allocation13 + $0x28] sm:$0xff]
    %v1098 = vld [vmem:[#allocation13 + $0x30] sm:$0xff]
    %v1099 = vld [vmem:[#allocation13 + $0x38] sm:$0xff]
    %v1100 = vld [vmem:[%s22] sm:$0x1]
    %v1102 = vlaneseq
    %v1103 = vshrl.u32 %v1102, 7
    %v1104 = vsub.s32 0, %v1103
    %v1105 = vrot.slane %v1100, %v1104
    %v1108 = vsel %vm567, %v1089, 0
    %1110 = vmatprep.subr.mxu0 0.0
    %1111 = vmatpush1.msra.mxu0 0.0
    %1112 = vmatprep.subr.mxu0 0.0
    %1113 = vmatpush1.msra.mxu0 0.0
    %1114 = vmatprep.subr.mxu0 0.0
    %1115 = vmatpush1.msra.mxu0 0.0
    %1116 = vmatprep.subr.mxu0 0.0
    %1117 = vmatpush1.msra.mxu0 0.0
    %1118 = vmatprep.subr.mxu0 0.0
    %1119 = vmatpush1.msra.mxu0 0.0
    %1120 = vmatprep.subr.mxu0 0.0
    %1121 = vmatpush1.msra.mxu0 0.0
    %1122 = vmatprep.subr.mxu0 0.0
    %1123 = vmatpush1.msra.mxu0 0.0
    %1124 = vmatprep.subr.mxu0 0.0
    %1125 = vmatpush1.msra.mxu0 0.0
    %1126 = vmatprep.subr.mxu0 0.0
    %1127 = vmatpush1.msra.mxu0 %v1099
    %1128 = vmatprep.subr.mxu0 0.0
    %1129 = vmatpush1.msra.mxu0 %v1098
    %1130 = vmatprep.subr.mxu0 0.0
    %1131 = vmatpush1.msra.mxu0 %v1097
    %1132 = vmatprep.subr.mxu0 0.0
    %1133 = vmatpush1.msra.mxu0 %v1096
    %1134 = vmatprep.subr.mxu0 0.0
    %1135 = vmatpush1.msra.mxu0 %v1095
    %1136 = vmatprep.subr.mxu0 0.0
    %1137 = vmatpush1.msra.mxu0 %v1094
    %1138 = vmatprep.subr.mxu0 0.0
    %1139 = vmatpush1.msra.mxu0 %v1093
    %1140 = vmatprep.subr.mxu0 0.0
    %1141 = vmatpush1.msra.mxu0 %v1092
    %1142 = vmatprep.subr.mxu0 0.0
    %1143 = vmatpush2.msra.mxu0 0.0
    %1144 = vmatprep.subr.mxu0 0.0
    %1145 = vmatpush2.msra.mxu0 0.0
    %1146 = vmatprep.subr.mxu0 0.0
    %1147 = vmatpush2.msra.mxu0 0.0
    %1148 = vmatprep.subr.mxu0 0.0
    %1149 = vmatpush2.msra.mxu0 0.0
    %1150 = vmatprep.subr.mxu0 0.0
    %1151 = vmatpush2.msra.mxu0 0.0
    %1152 = vmatprep.subr.mxu0 0.0
    %1153 = vmatpush2.msra.mxu0 0.0
    %1154 = vmatprep.subr.mxu0 0.0
    %1155 = vmatpush2.msra.mxu0 0.0
    %1156 = vmatprep.subr.mxu0 0.0
    %1157 = vmatpush2.msra.mxu0 0.0
    %1158 = vmatprep.subr.mxu0 0.0
    %1159 = vmatpush2.msra.mxu0 0.0
    %1160 = vmatprep.subr.mxu0 0.0
    %1161 = vmatpush2.msra.mxu0 0.0
    %1162 = vmatprep.subr.mxu0 0.0
    %1163 = vmatpush2.msra.mxu0 0.0
    %1164 = vmatprep.subr.mxu0 0.0
    %1165 = vmatpush2.msra.mxu0 0.0
    %1166 = vmatprep.subr.mxu0 0.0
    %1167 = vmatpush2.msra.mxu0 0.0
    %1168 = vmatprep.subr.mxu0 0.0
    %1169 = vmatpush2.msra.mxu0 0.0
    %1170 = vmatprep.subr.mxu0 0.0
    %1171 = vmatpush2.msra.mxu0 0.0
    %1172 = vmatprep.subr.mxu0 0.0
    %1173 = vmatpush2.msra.mxu0 0.0
    %1174 = vmatprep.mubr.f32.mxu0 0.0
    %1175 = vmatmul.mubr.f32.gmra.mxu0 %v1108
    %v1176 = vpop.f32.mrf.mxu0
    %v1177 = vadd.f32 %v1105, %v1176
    %v1178 = vpop.f32.mrf.mxu0
    %1179 = vdwg.mxu0
    %vm1180 = vcmask 519168
    %1181 = vst.msk [vmem:[%s23] sm:$0xf] %vm1180, %v1177
    // Predicated region
    $region126: #{decoder_forward.1} parent=1 // pred_check
      _
    $region127: #{decoder_forward.1} parent=1 // pred_check_branch
      %1183 = sbr.rel (0) target = $region129
    $region128: #{decoder_forward.1} parent=1 // pred_region
      _
    $region129: #{decoder_forward.1} parent=1 // pred_fallthru
      _
    // Predicated region
    $region130: #{decoder_forward.1} parent=1 // pred_check
      _
    $region131: #{decoder_forward.1} parent=1 // pred_check_branch
      %1185 = sbr.rel (0) target = $region133
    $region132: #{decoder_forward.1} parent=1 // pred_region
      _
    $region133: #{decoder_forward.1} parent=1 // pred_fallthru
      _
    %1186 = vsyncpa [#allocation3], 1
    %1187 = vsyncpa [#allocation5], 1
    %1188 = vsyncpa [#allocation8], 1
    %1189 = vsyncpa [#allocation11], 1
    %1190 = vsyncpa [#allocation14], 1

</llo_original>
